<compile_context>
chip_gen: v5e
topology: v5e:2x2
jax: 0.10.0
libtpu: 0.0.40
codegen_flags: <defaults>
</compile_context>

<pallas_src>
import jax
import jax.numpy as jnp
from jax import lax
from jax.experimental import pallas as pl
from jax.experimental.pallas import tpu as pltpu

_EPS = 1e-12  # added to squared norms before rsqrt (reference has no eps)

_YUV = jnp.array([[0.577350, 0.577350, 0.577350],
                  [-0.577350, 0.788675, -0.211325],
                  [-0.577350, -0.211325, 0.788675]], dtype=jnp.float32)


def _mean2d(a):
    """Mean of a 2-D array, returned as a (1, 1) array (no rank-0 values)."""
    s = jnp.sum(a, axis=1, keepdims=True)
    s = jnp.sum(s, axis=0, keepdims=True)
    return s * (1.0 / float(a.shape[0] * a.shape[1]))


def _pick_ns_tile(ns):
    """Largest 128-multiple tile (<=512) dividing ns, else a single full block."""
    for t in (512, 256, 128):
        if ns % t == 0:
            return t
    return ns


def make_fused_style_kernel(n, d, ns, add_euclid_main, use_bf16):
    """Fused kernel: grid iterates over ns-chunks of the style features."""
    inv_n = 1.0 / float(n)
    inv_ns = 1.0 / float(ns)
    cast = (lambda v: v.astype(jnp.bfloat16)) if use_bf16 else (lambda v: v)

    def kernel(eft_ref, cft_ref, sf_ref, ict_ref, sct_ref,          # inputs
               lc_ref, lm_ref, lr_ref, lp_ref,                      # outputs
               rmin_r, rmin_p, csum_r, csum_p, ysum, yyt):          # scratch
        j = pl.program_id(0)
        nj = pl.num_programs(0)

        # ------------------------------------------------------- init
        @pl.when(j == 0)
        def _init():
            rmin_r[...] = jnp.full_like(rmin_r, jnp.inf)
            rmin_p[...] = jnp.full_like(rmin_p, jnp.inf)
            csum_r[...] = jnp.zeros_like(csum_r)
            csum_p[...] = jnp.zeros_like(csum_p)
            ysum[...] = jnp.zeros_like(ysum)
            yyt[...] = jnp.zeros_like(yyt)

        x = eft_ref[...]                                   # (n, d)   resident
        y = sf_ref[...]                                    # (d, ns_t) pipelined

        # ------------------------------------------------- main REMD (chunk)
        xn2 = jnp.sum(x * x, axis=1, keepdims=True)        # (n, 1)
        yn2 = jnp.sum(y * y, axis=0, keepdims=True)        # (1, ns_t)
        g = lax.dot_general(cast(x), cast(y), (((1,), (0,)), ((), ())),
                            preferred_element_type=jnp.float32)   # (n, ns_t)
        cost = 1.0 - g * lax.rsqrt(xn2 + _EPS) * lax.rsqrt(yn2 + _EPS)
        if add_euclid_main:                                 # only when d <= 3
            eucl = jnp.clip(xn2 + yn2 - 2.0 * g, 1e-5, 1e5) * (1.0 / float(d))
            cost = cost + jnp.sqrt(eucl)
        rmin_r[...] = jnp.minimum(rmin_r[...],
                                  jnp.min(cost, axis=1, keepdims=True))
        col_min = jnp.min(cost, axis=0, keepdims=True)      # (1, ns_t)
        csum_r[...] += jnp.sum(col_min, axis=1, keepdims=True)

        # ---------------------------------------- moment loss (style side)
        ysum[...] += jnp.sum(y, axis=1, keepdims=True)      # (d, 1)
        yyt[...] += lax.dot_general(cast(y), cast(y), (((1,), (1,)), ((), ())),
                                    preferred_element_type=jnp.float32)

        # ----------------------------------------- color REMD (3 channels)
        # K = 3 gram done as three VPU broadcast multiply-adds (no MXU pass).
        ic = ict_ref[...]                                   # (n, 3)  resident
        sc = sct_ref[...]                                   # (3, ns_t)
        icn2 = jnp.sum(ic * ic, axis=1, keepdims=True)      # (n, 1)
        scn2 = jnp.sum(sc * sc, axis=0, keepdims=True)      # (1, ns_t)
        gp = (ic[:, 0:1] * sc[0:1, :] +
              ic[:, 1:2] * sc[1:2, :] +
              ic[:, 2:3] * sc[2:3, :])                      # (n, ns_t)
        cost_p = 1.0 - gp * lax.rsqrt(icn2 + _EPS) * lax.rsqrt(scn2 + _EPS)
        eucl_p = jnp.clip(icn2 + scn2 - 2.0 * gp, 1e-5, 1e5) * (1.0 / 3.0)
        cost_p = cost_p + jnp.sqrt(eucl_p)
        rmin_p[...] = jnp.minimum(rmin_p[...],
                                  jnp.min(cost_p, axis=1, keepdims=True))
        colp_min = jnp.min(cost_p, axis=0, keepdims=True)
        csum_p[...] += jnp.sum(colp_min, axis=1, keepdims=True)

        # ------------------------------------------------------- finalize
        @pl.when(j == nj - 1)
        def _finalize():
            # REMD losses: max(mean of row mins, mean of col mins)
            lr_ref[...] = jnp.maximum(
                jnp.sum(rmin_r[...], axis=0, keepdims=True) * inv_n,
                csum_r[...] * inv_ns)
            lp_ref[...] = jnp.maximum(
                jnp.sum(rmin_p[...], axis=0, keepdims=True) * inv_n,
                csum_p[...] * inv_ns)

            # Moment loss: mean + covariance matching.
            xm = jnp.sum(x, axis=0, keepdims=True) * inv_n             # (1, d)
            xc = x - xm                                                # (n, d)
            x_cov = lax.dot_general(xc, xc, (((0,), (0,)), ((), ())),
                                    preferred_element_type=jnp.float32)
            x_cov = x_cov * (1.0 / float(n - 1))                       # (d, d)
            ym = ysum[...] * inv_ns                                    # (d, 1)
            # Yc Yc^T = Y Y^T - ns * m m^T
            y_cov = (yyt[...] - float(ns) * (ym * ym.T)) * (1.0 / float(ns - 1))
            lm_ref[...] = (_mean2d(jnp.abs(xm - ym.T)) +
                           _mean2d(jnp.abs(x_cov - y_cov)))

            # Content loss: mean |cos(x,x) - cos(c,c)| (f32 for accuracy).
            cfm = cft_ref[...]                                         # (n, d)
            inv_xn = lax.rsqrt(xn2 + _EPS)                             # (n, 1)
            inv_cn = lax.rsqrt(jnp.sum(cfm * cfm, axis=1, keepdims=True) + _EPS)
            gx = lax.dot_general(x, x, (((1,), (1,)), ((), ())),
                                 preferred_element_type=jnp.float32)  # (n, n)
            gc = lax.dot_general(cfm, cfm, (((1,), (1,)), ((), ())),
                                 preferred_element_type=jnp.float32)
            sim_x = gx * inv_xn * inv_xn.T
            sim_c = gc * inv_cn * inv_cn.T
            lc_ref[...] = _mean2d(jnp.abs(sim_x - sim_c))

    return kernel


def _fused_style_losses(eft, cft, sf, ict, sct, *, add_euclid_main, use_bf16):
    n, d = eft.shape
    ns = sf.shape[1]
    ns_t = _pick_ns_tile(ns)
    n_chunks = ns // ns_t

    kernel = make_fused_style_kernel(n, d, ns, add_euclid_main, use_bf16)

    grid_spec = pltpu.PrefetchScalarGridSpec(
        num_scalar_prefetch=0,
        grid=(n_chunks,),
        in_specs=[
            pl.BlockSpec((n, d), lambda j: (0, 0)),      # eft  (resident)
            pl.BlockSpec((n, d), lambda j: (0, 0)),      # cft  (resident)
            pl.BlockSpec((d, ns_t), lambda j: (0, j)),   # sf   (pipelined)
            pl.BlockSpec((n, 3), lambda j: (0, 0)),      # im_color^T (resident)
            pl.BlockSpec((3, ns_t), lambda j: (0, j)),   # style_color (pipelined)
        ],
        out_specs=[pl.BlockSpec((1, 1), lambda j: (0, 0)) for _ in range(4)],
        scratch_shapes=[
            pltpu.VMEM((n, 1), jnp.float32),   # running row-min (REMD)
            pltpu.VMEM((n, 1), jnp.float32),   # running row-min (color REMD)
            pltpu.VMEM((1, 1), jnp.float32),   # col-min sum (REMD)
            pltpu.VMEM((1, 1), jnp.float32),   # col-min sum (color REMD)
            pltpu.VMEM((d, 1), jnp.float32),   # sum of style features
            pltpu.VMEM((d, d), jnp.float32),   # accumulated Y Y^T
        ],
    )

    lc, lm, lr, lp = pl.pallas_call(
        kernel,
        out_shape=tuple(jax.ShapeDtypeStruct((1, 1), jnp.float32)
                        for _ in range(4)),
        grid_spec=grid_spec,
        compiler_params=pltpu.CompilerParams(
            dimension_semantics=("arbitrary",),
            vmem_limit_bytes=64 * 1024 * 1024),
    )(eft, cft, sf, ict, sct)
    return lc[0, 0], lm[0, 0], lr[0, 0], lp[0, 0]


def style_loss_forward(extracted_features, content_feature, vgg_style_features,
                       indices, alpha, *, use_bf16_matmul=False):
    """extracted_features / content_feature: (1, C, H, W)  [NCHW]
       vgg_style_features: (1, C, Ns)
       indices: (n,) int32 flat spatial indices into H*W
       alpha: scalar
    """
    b, c, h, w = extracted_features.shape

    # CreateSpatialTensor: gather sampled spatial positions.  Laid out as
    # (n, C) -- samples on sublanes, channels on lanes -- so the REMD /
    # content grams need no MXU LHS transpose.
    ef_hw_c = jnp.transpose(
        extracted_features.reshape(b, c, h * w)[0]).astype(jnp.float32)
    cf_hw_c = jnp.transpose(
        content_feature.reshape(b, c, h * w)[0]).astype(jnp.float32)
    eft = jnp.take(ef_hw_c, indices, axis=0)              # (n, C)
    cft = jnp.take(cf_hw_c, indices, axis=0)              # (n, C)
    sf = vgg_style_features.astype(jnp.float32)[0]        # (C, Ns)

    # RGBtoYUV on the first three channels (tiny 3x3 transforms, plain JAX).
    ict = eft[:, :3] @ _YUV.T                             # (n, 3)
    sct = _YUV @ sf[:3, :]                                # (3, Ns)

    lc, lm, lr, lp_raw = _fused_style_losses(
        eft, cft, sf, ict, sct,
        add_euclid_main=(c <= 3), use_bf16=use_bf16_matmul)

    lp = lp_raw / alpha
    total_loss = (lr + lm + lp + lc * alpha) / (2.0 + alpha + 1.0 / alpha)
    return total_loss


# ---------------------------------------------------------------------------
if __name__ == "__main__":
    key = jax.random.PRNGKey(0)
    k1, k2, k3, k4 = jax.random.split(key, 4)

    B, C, H, W = 1, 8, 16, 16      # small NCHW feature map
    N_SEL, N_STYLE = 64, 64        # sampled spatial positions / style samples

    extracted = jax.random.normal(k1, (B, C, H, W), dtype=jnp.float32)
    content = jax.random.normal(k2, (B, C, H, W), dtype=jnp.float32)
    style = jax.random.normal(k3, (B, C, N_STYLE), dtype=jnp.float32)
    indices = jax.random.randint(k4, (N_SEL,), 0, H * W, dtype=jnp.int32)
    alpha = 4.0

    loss = jax.jit(style_loss_forward)(extracted, content, style, indices, alpha)
    loss = jax.block_until_ready(loss)
    assert jnp.isfinite(loss), "loss is not finite"
    print("KERNEL_OK")
</pallas_src>

<mosaic_0001>
module attributes {stable_mosaic.version = 11 : i64} {
  func.func @kernel(%arg0: i32, %arg1: memref<64x8xf32, #tpu.memory_space<vmem>>, %arg2: memref<64x8xf32, #tpu.memory_space<vmem>>, %arg3: memref<8x64xf32, #tpu.memory_space<vmem>>, %arg4: memref<64x3xf32, #tpu.memory_space<vmem>>, %arg5: memref<3x64xf32, #tpu.memory_space<vmem>>, %arg6: memref<1x1xf32, #tpu.memory_space<vmem>>, %arg7: memref<1x1xf32, #tpu.memory_space<vmem>>, %arg8: memref<1x1xf32, #tpu.memory_space<vmem>>, %arg9: memref<1x1xf32, #tpu.memory_space<vmem>>, %arg10: memref<64x1xf32, #tpu.memory_space<vmem>>, %arg11: memref<64x1xf32, #tpu.memory_space<vmem>>, %arg12: memref<1x1xf32, #tpu.memory_space<vmem>>, %arg13: memref<1x1xf32, #tpu.memory_space<vmem>>, %arg14: memref<8x1xf32, #tpu.memory_space<vmem>>, %arg15: memref<8x8xf32, #tpu.memory_space<vmem>>) attributes {dimension_semantics = [#tpu.dimension_semantics<arbitrary>], iteration_bounds = array<i64: 1>, scalar_prefetch = 0 : i64, scratch_operands = 6 : i64, tpu.core_type = #tpu.core_type<tc>, window_params = [{pipeline_mode = #tpu.pipeline_mode<synchronous>, transform_indices = @transform_0, window_bounds = array<i64: 64, 8>}, {pipeline_mode = #tpu.pipeline_mode<synchronous>, transform_indices = @transform_1, window_bounds = array<i64: 64, 8>}, {transform_indices = @transform_2, window_bounds = array<i64: 8, 64>}, {pipeline_mode = #tpu.pipeline_mode<synchronous>, transform_indices = @transform_3, window_bounds = array<i64: 64, 3>}, {transform_indices = @transform_4, window_bounds = array<i64: 3, 64>}, {pipeline_mode = #tpu.pipeline_mode<synchronous>, transform_indices = @transform_5, window_bounds = array<i64: 1, 1>}, {pipeline_mode = #tpu.pipeline_mode<synchronous>, transform_indices = @transform_6, window_bounds = array<i64: 1, 1>}, {pipeline_mode = #tpu.pipeline_mode<synchronous>, transform_indices = @transform_7, window_bounds = array<i64: 1, 1>}, {pipeline_mode = #tpu.pipeline_mode<synchronous>, transform_indices = @transform_8, window_bounds = array<i64: 1, 1>}]} {
    %c0_i32 = arith.constant 0 : i32
    %0 = arith.cmpi eq, %arg0, %c0_i32 : i32
    %1 = arith.extui %0 : i1 to i32
    %c0_i32_0 = arith.constant 0 : i32
    %2 = arith.cmpi ne, %1, %c0_i32_0 : i32
    scf.if %2 {
      %cst_56 = arith.constant 0x7F800000 : f32
      %111 = vector.broadcast %cst_56 : f32 to vector<64x1xf32>
      %c0_57 = arith.constant 0 : index
      %c0_58 = arith.constant 0 : index
      %112 = vector.load %arg10[%c0_57, %c0_58] : memref<64x1xf32, #tpu.memory_space<vmem>>, vector<64x1xf32>
      tpu.vector_store %arg10[%c0_57, %c0_58], %111 {strides = array<i32>} : memref<64x1xf32, #tpu.memory_space<vmem>>, vector<64x1xf32>,
      %cst_59 = arith.constant 0x7F800000 : f32
      %113 = vector.broadcast %cst_59 : f32 to vector<64x1xf32>
      %c0_60 = arith.constant 0 : index
      %c0_61 = arith.constant 0 : index
      %114 = vector.load %arg11[%c0_60, %c0_61] : memref<64x1xf32, #tpu.memory_space<vmem>>, vector<64x1xf32>
      tpu.vector_store %arg11[%c0_60, %c0_61], %113 {strides = array<i32>} : memref<64x1xf32, #tpu.memory_space<vmem>>, vector<64x1xf32>,
      %cst_62 = arith.constant 0.000000e+00 : f32
      %115 = vector.broadcast %cst_62 : f32 to vector<1x1xf32>
      %c0_63 = arith.constant 0 : index
      %c0_64 = arith.constant 0 : index
      %116 = vector.load %arg12[%c0_63, %c0_64] : memref<1x1xf32, #tpu.memory_space<vmem>>, vector<1x1xf32>
      tpu.vector_store %arg12[%c0_63, %c0_64], %115 {strides = array<i32>} : memref<1x1xf32, #tpu.memory_space<vmem>>, vector<1x1xf32>,
      %cst_65 = arith.constant 0.000000e+00 : f32
      %117 = vector.broadcast %cst_65 : f32 to vector<1x1xf32>
      %c0_66 = arith.constant 0 : index
      %c0_67 = arith.constant 0 : index
      %118 = vector.load %arg13[%c0_66, %c0_67] : memref<1x1xf32, #tpu.memory_space<vmem>>, vector<1x1xf32>
      tpu.vector_store %arg13[%c0_66, %c0_67], %117 {strides = array<i32>} : memref<1x1xf32, #tpu.memory_space<vmem>>, vector<1x1xf32>,
      %cst_68 = arith.constant 0.000000e+00 : f32
      %119 = vector.broadcast %cst_68 : f32 to vector<8x1xf32>
      %c0_69 = arith.constant 0 : index
      %c0_70 = arith.constant 0 : index
      %120 = vector.load %arg14[%c0_69, %c0_70] : memref<8x1xf32, #tpu.memory_space<vmem>>, vector<8x1xf32>
      tpu.vector_store %arg14[%c0_69, %c0_70], %119 {strides = array<i32>} : memref<8x1xf32, #tpu.memory_space<vmem>>, vector<8x1xf32>,
      %cst_71 = arith.constant 0.000000e+00 : f32
      %121 = vector.broadcast %cst_71 : f32 to vector<8x8xf32>
      %c0_72 = arith.constant 0 : index
      %c0_73 = arith.constant 0 : index
      %122 = vector.load %arg15[%c0_72, %c0_73] : memref<8x8xf32, #tpu.memory_space<vmem>>, vector<8x8xf32>
      tpu.vector_store %arg15[%c0_72, %c0_73], %121 {strides = array<i32>} : memref<8x8xf32, #tpu.memory_space<vmem>>, vector<8x8xf32>,
    } else {
    }
    %c0 = arith.constant 0 : index
    %c0_1 = arith.constant 0 : index
    %3 = vector.load %arg1[%c0, %c0_1] : memref<64x8xf32, #tpu.memory_space<vmem>>, vector<64x8xf32>
    %c0_2 = arith.constant 0 : index
    %c0_3 = arith.constant 0 : index
    %4 = vector.load %arg3[%c0_2, %c0_3] : memref<8x64xf32, #tpu.memory_space<vmem>>, vector<8x64xf32>
    %5 = arith.mulf %3, %3 : vector<64x8xf32>
    %cst = arith.constant dense<0.000000e+00> : vector<64xf32>
    %6 = vector.multi_reduction <add>, %5, %cst [1] : vector<64x8xf32> to vector<64xf32>
    %7 = vector.shape_cast %6 : vector<64xf32> to vector<64x1xf32>
    %8 = arith.mulf %4, %4 : vector<8x64xf32>
    %cst_4 = arith.constant dense<0.000000e+00> : vector<64xf32>
    %9 = vector.multi_reduction <add>, %8, %cst_4 [0] : vector<8x64xf32> to vector<64xf32>
    %10 = vector.shape_cast %9 : vector<64xf32> to vector<1x64xf32>
    %cst_5 = arith.constant dense<0.000000e+00> : vector<64x64xf32>
    %11 = tpu.matmul %3, %4, %cst_5 {dimension_numbers = #tpu.dot_dimension_numbers<[1], [0], [0], [1], [0, 0, 1, 1], [], []>} : vector<64x8xf32>, vector<8x64xf32>, vector<64x64xf32> -> vector<64x64xf32>
    %cst_6 = arith.constant 9.99999996E-13 : f32
    %12 = vector.broadcast %cst_6 : f32 to vector<64x1xf32>
    %13 = arith.addf %7, %12 : vector<64x1xf32>
    %14 = math.rsqrt %13 : vector<64x1xf32>
    %15 = vector.broadcast %14 : vector<64x1xf32> to vector<64x64xf32>
    %16 = arith.mulf %11, %15 : vector<64x64xf32>
    %cst_7 = arith.constant 9.99999996E-13 : f32
    %17 = vector.broadcast %cst_7 : f32 to vector<1x64xf32>
    %18 = arith.addf %10, %17 : vector<1x64xf32>
    %19 = math.rsqrt %18 : vector<1x64xf32>
    %20 = vector.broadcast %19 : vector<1x64xf32> to vector<64x64xf32>
    %21 = arith.mulf %16, %20 : vector<64x64xf32>
    %cst_8 = arith.constant 1.000000e+00 : f32
    %22 = vector.broadcast %cst_8 : f32 to vector<64x64xf32>
    %23 = arith.subf %22, %21 : vector<64x64xf32>
    %c0_9 = arith.constant 0 : index
    %c0_10 = arith.constant 0 : index
    %24 = vector.load %arg10[%c0_9, %c0_10] : memref<64x1xf32, #tpu.memory_space<vmem>>, vector<64x1xf32>
    %cst_11 = arith.constant dense<0x7F800000> : vector<64xf32>
    %25 = vector.multi_reduction <minimumf>, %23, %cst_11 [1] : vector<64x64xf32> to vector<64xf32>
    %26 = vector.shape_cast %25 : vector<64xf32> to vector<64x1xf32>
    %27 = arith.minimumf %24, %26 : vector<64x1xf32>
    %c0_12 = arith.constant 0 : index
    %c0_13 = arith.constant 0 : index
    %28 = vector.load %arg10[%c0_12, %c0_13] : memref<64x1xf32, #tpu.memory_space<vmem>>, vector<64x1xf32>
    tpu.vector_store %arg10[%c0_12, %c0_13], %27 {strides = array<i32>} : memref<64x1xf32, #tpu.memory_space<vmem>>, vector<64x1xf32>,
    %cst_14 = arith.constant dense<0x7F800000> : vector<64xf32>
    %29 = vector.multi_reduction <minimumf>, %23, %cst_14 [0] : vector<64x64xf32> to vector<64xf32>
    %30 = vector.shape_cast %29 : vector<64xf32> to vector<1x64xf32>
    %c0_15 = arith.constant 0 : index
    %c0_16 = arith.constant 0 : index
    %31 = vector.load %arg12[%c0_15, %c0_16] : memref<1x1xf32, #tpu.memory_space<vmem>>, vector<1x1xf32>
    %cst_17 = arith.constant dense<0.000000e+00> : vector<1xf32>
    %32 = vector.multi_reduction <add>, %30, %cst_17 [1] : vector<1x64xf32> to vector<1xf32>
    %33 = vector.shape_cast %32 : vector<1xf32> to vector<1x1xf32>
    %34 = arith.addf %31, %33 : vector<1x1xf32>
    %c0_18 = arith.constant 0 : index
    %c0_19 = arith.constant 0 : index
    %35 = vector.load %arg12[%c0_18, %c0_19] : memref<1x1xf32, #tpu.memory_space<vmem>>, vector<1x1xf32>
    tpu.vector_store %arg12[%c0_18, %c0_19], %34 {strides = array<i32>} : memref<1x1xf32, #tpu.memory_space<vmem>>, vector<1x1xf32>,
    %c0_20 = arith.constant 0 : index
    %c0_21 = arith.constant 0 : index
    %36 = vector.load %arg14[%c0_20, %c0_21] : memref<8x1xf32, #tpu.memory_space<vmem>>, vector<8x1xf32>
    %cst_22 = arith.constant dense<0.000000e+00> : vector<8xf32>
    %37 = vector.multi_reduction <add>, %4, %cst_22 [1] : vector<8x64xf32> to vector<8xf32>
    %38 = vector.shape_cast %37 : vector<8xf32> to vector<8x1xf32>
    %39 = arith.addf %36, %38 : vector<8x1xf32>
    %c0_23 = arith.constant 0 : index
    %c0_24 = arith.constant 0 : index
    %40 = vector.load %arg14[%c0_23, %c0_24] : memref<8x1xf32, #tpu.memory_space<vmem>>, vector<8x1xf32>
    tpu.vector_store %arg14[%c0_23, %c0_24], %39 {strides = array<i32>} : memref<8x1xf32, #tpu.memory_space<vmem>>, vector<8x1xf32>,
    %c0_25 = arith.constant 0 : index
    %c0_26 = arith.constant 0 : index
    %41 = vector.load %arg15[%c0_25, %c0_26] : memref<8x8xf32, #tpu.memory_space<vmem>>, vector<8x8xf32>
    %cst_27 = arith.constant dense<0.000000e+00> : vector<8x8xf32>
    %42 = tpu.matmul %4, %4, %cst_27 {dimension_numbers = #tpu.dot_dimension_numbers<[1], [1], [0], [0], [0, 0, 1, 0], [], []>} : vector<8x64xf32>, vector<8x64xf32>, vector<8x8xf32> -> vector<8x8xf32>
    %43 = arith.addf %41, %42 : vector<8x8xf32>
    %c0_28 = arith.constant 0 : index
    %c0_29 = arith.constant 0 : index
    %44 = vector.load %arg15[%c0_28, %c0_29] : memref<8x8xf32, #tpu.memory_space<vmem>>, vector<8x8xf32>
    tpu.vector_store %arg15[%c0_28, %c0_29], %43 {strides = array<i32>} : memref<8x8xf32, #tpu.memory_space<vmem>>, vector<8x8xf32>,
    %c0_30 = arith.constant 0 : index
    %c0_31 = arith.constant 0 : index
    %45 = vector.load %arg4[%c0_30, %c0_31] : memref<64x3xf32, #tpu.memory_space<vmem>>, vector<64x3xf32>
    %c0_32 = arith.constant 0 : index
    %c0_33 = arith.constant 0 : index
    %46 = vector.load %arg5[%c0_32, %c0_33] : memref<3x64xf32, #tpu.memory_space<vmem>>, vector<3x64xf32>
    %47 = arith.mulf %45, %45 : vector<64x3xf32>
    %cst_34 = arith.constant dense<0.000000e+00> : vector<64xf32>
    %48 = vector.multi_reduction <add>, %47, %cst_34 [1] : vector<64x3xf32> to vector<64xf32>
    %49 = vector.shape_cast %48 : vector<64xf32> to vector<64x1xf32>
    %50 = arith.mulf %46, %46 : vector<3x64xf32>
    %cst_35 = arith.constant dense<0.000000e+00> : vector<64xf32>
    %51 = vector.multi_reduction <add>, %50, %cst_35 [0] : vector<3x64xf32> to vector<64xf32>
    %52 = vector.shape_cast %51 : vector<64xf32> to vector<1x64xf32>
    %53 = vector.extract_strided_slice %45 {offsets = [0, 0], sizes = [64, 1], strides = [1, 1]} : vector<64x3xf32> to vector<64x1xf32>
    %54 = vector.extract_strided_slice %46 {offsets = [0, 0], sizes = [1, 64], strides = [1, 1]} : vector<3x64xf32> to vector<1x64xf32>
    %55 = vector.broadcast %53 : vector<64x1xf32> to vector<64x64xf32>
    %56 = vector.broadcast %54 : vector<1x64xf32> to vector<64x64xf32>
    %57 = arith.mulf %55, %56 : vector<64x64xf32>
    %58 = vector.extract_strided_slice %45 {offsets = [0, 1], sizes = [64, 1], strides = [1, 1]} : vector<64x3xf32> to vector<64x1xf32>
    %59 = vector.extract_strided_slice %46 {offsets = [1, 0], sizes = [1, 64], strides = [1, 1]} : vector<3x64xf32> to vector<1x64xf32>
    %60 = vector.broadcast %58 : vector<64x1xf32> to vector<64x64xf32>
    %61 = vector.broadcast %59 : vector<1x64xf32> to vector<64x64xf32>
    %62 = arith.mulf %60, %61 : vector<64x64xf32>
    %63 = arith.addf %57, %62 : vector<64x64xf32>
    %64 = vector.extract_strided_slice %45 {offsets = [0, 2], sizes = [64, 1], strides = [1, 1]} : vector<64x3xf32> to vector<64x1xf32>
    %65 = vector.extract_strided_slice %46 {offsets = [2, 0], sizes = [1, 64], strides = [1, 1]} : vector<3x64xf32> to vector<1x64xf32>
    %66 = vector.broadcast %64 : vector<64x1xf32> to vector<64x64xf32>
    %67 = vector.broadcast %65 : vector<1x64xf32> to vector<64x64xf32>
    %68 = arith.mulf %66, %67 : vector<64x64xf32>
    %69 = arith.addf %63, %68 : vector<64x64xf32>
    %cst_36 = arith.constant 9.99999996E-13 : f32
    %70 = vector.broadcast %cst_36 : f32 to vector<64x1xf32>
    %71 = arith.addf %49, %70 : vector<64x1xf32>
    %72 = math.rsqrt %71 : vector<64x1xf32>
    %73 = vector.broadcast %72 : vector<64x1xf32> to vector<64x64xf32>
    %74 = arith.mulf %69, %73 : vector<64x64xf32>
    %cst_37 = arith.constant 9.99999996E-13 : f32
    %75 = vector.broadcast %cst_37 : f32 to vector<1x64xf32>
    %76 = arith.addf %52, %75 : vector<1x64xf32>
    %77 = math.rsqrt %76 : vector<1x64xf32>
    %78 = vector.broadcast %77 : vector<1x64xf32> to vector<64x64xf32>
    %79 = arith.mulf %74, %78 : vector<64x64xf32>
    %cst_38 = arith.constant 1.000000e+00 : f32
    %80 = vector.broadcast %cst_38 : f32 to vector<64x64xf32>
    %81 = arith.subf %80, %79 : vector<64x64xf32>
    %82 = vector.broadcast %49 : vector<64x1xf32> to vector<64x64xf32>
    %83 = vector.broadcast %52 : vector<1x64xf32> to vector<64x64xf32>
    %84 = arith.addf %82, %83 : vector<64x64xf32>
    %cst_39 = arith.constant 2.000000e+00 : f32
    %85 = vector.broadcast %cst_39 : f32 to vector<64x64xf32>
    %86 = arith.mulf %85, %69 : vector<64x64xf32>
    %87 = arith.subf %84, %86 : vector<64x64xf32>
    %cst_40 = arith.constant 9.99999974E-6 : f32
    %cst_41 = arith.constant 1.000000e+05 : f32
    %88 = vector.broadcast %cst_40 : f32 to vector<64x64xf32>
    %89 = arith.maximumf %88, %87 : vector<64x64xf32>
    %90 = vector.broadcast %cst_41 : f32 to vector<64x64xf32>
    %91 = arith.minimumf %90, %89 : vector<64x64xf32>
    %cst_42 = arith.constant 0.333333343 : f32
    %92 = vector.broadcast %cst_42 : f32 to vector<64x64xf32>
    %93 = arith.mulf %91, %92 : vector<64x64xf32>
    %94 = math.sqrt %93 : vector<64x64xf32>
    %95 = arith.addf %81, %94 : vector<64x64xf32>
    %c0_43 = arith.constant 0 : index
    %c0_44 = arith.constant 0 : index
    %96 = vector.load %arg11[%c0_43, %c0_44] : memref<64x1xf32, #tpu.memory_space<vmem>>, vector<64x1xf32>
    %cst_45 = arith.constant dense<0x7F800000> : vector<64xf32>
    %97 = vector.multi_reduction <minimumf>, %95, %cst_45 [1] : vector<64x64xf32> to vector<64xf32>
    %98 = vector.shape_cast %97 : vector<64xf32> to vector<64x1xf32>
    %99 = arith.minimumf %96, %98 : vector<64x1xf32>
    %c0_46 = arith.constant 0 : index
    %c0_47 = arith.constant 0 : index
    %100 = vector.load %arg11[%c0_46, %c0_47] : memref<64x1xf32, #tpu.memory_space<vmem>>, vector<64x1xf32>
    tpu.vector_store %arg11[%c0_46, %c0_47], %99 {strides = array<i32>} : memref<64x1xf32, #tpu.memory_space<vmem>>, vector<64x1xf32>,
    %cst_48 = arith.constant dense<0x7F800000> : vector<64xf32>
    %101 = vector.multi_reduction <minimumf>, %95, %cst_48 [0] : vector<64x64xf32> to vector<64xf32>
    %102 = vector.shape_cast %101 : vector<64xf32> to vector<1x64xf32>
    %c0_49 = arith.constant 0 : index
    %c0_50 = arith.constant 0 : index
    %103 = vector.load %arg13[%c0_49, %c0_50] : memref<1x1xf32, #tpu.memory_space<vmem>>, vector<1x1xf32>
    %cst_51 = arith.constant dense<0.000000e+00> : vector<1xf32>
    %104 = vector.multi_reduction <add>, %102, %cst_51 [1] : vector<1x64xf32> to vector<1xf32>
    %105 = vector.shape_cast %104 : vector<1xf32> to vector<1x1xf32>
    %106 = arith.addf %103, %105 : vector<1x1xf32>
    %c0_52 = arith.constant 0 : index
    %c0_53 = arith.constant 0 : index
    %107 = vector.load %arg13[%c0_52, %c0_53] : memref<1x1xf32, #tpu.memory_space<vmem>>, vector<1x1xf32>
    tpu.vector_store %arg13[%c0_52, %c0_53], %106 {strides = array<i32>} : memref<1x1xf32, #tpu.memory_space<vmem>>, vector<1x1xf32>,
    %c0_i32_54 = arith.constant 0 : i32
    %108 = arith.cmpi eq, %arg0, %c0_i32_54 : i32
    %109 = arith.extui %108 : i1 to i32
    %c0_i32_55 = arith.constant 0 : i32
    %110 = arith.cmpi ne, %109, %c0_i32_55 : i32
    scf.if %110 {
      %c0_56 = arith.constant 0 : index
      %c0_57 = arith.constant 0 : index
      %111 = vector.load %arg10[%c0_56, %c0_57] : memref<64x1xf32, #tpu.memory_space<vmem>>, vector<64x1xf32>
      %cst_58 = arith.constant dense<0.000000e+00> : vector<1xf32>
      %112 = vector.multi_reduction <add>, %111, %cst_58 [0] : vector<64x1xf32> to vector<1xf32>
      %113 = vector.shape_cast %112 : vector<1xf32> to vector<1x1xf32>
      %cst_59 = arith.constant 1.562500e-02 : f32
      %114 = vector.broadcast %cst_59 : f32 to vector<1x1xf32>
      %115 = arith.mulf %113, %114 : vector<1x1xf32>
      %c0_60 = arith.constant 0 : index
      %c0_61 = arith.constant 0 : index
      %116 = vector.load %arg12[%c0_60, %c0_61] : memref<1x1xf32, #tpu.memory_space<vmem>>, vector<1x1xf32>
      %cst_62 = arith.constant 1.562500e-02 : f32
      %117 = vector.broadcast %cst_62 : f32 to vector<1x1xf32>
      %118 = arith.mulf %116, %117 : vector<1x1xf32>
      %119 = arith.maximumf %115, %118 : vector<1x1xf32>
      %c0_63 = arith.constant 0 : index
      %c0_64 = arith.constant 0 : index
      %120 = vector.load %arg8[%c0_63, %c0_64] : memref<1x1xf32, #tpu.memory_space<vmem>>, vector<1x1xf32>
      tpu.vector_store %arg8[%c0_63, %c0_64], %119 {strides = array<i32>} : memref<1x1xf32, #tpu.memory_space<vmem>>, vector<1x1xf32>,
      %c0_65 = arith.constant 0 : index
      %c0_66 = arith.constant 0 : index
      %121 = vector.load %arg11[%c0_65, %c0_66] : memref<64x1xf32, #tpu.memory_space<vmem>>, vector<64x1xf32>
      %cst_67 = arith.constant dense<0.000000e+00> : vector<1xf32>
      %122 = vector.multi_reduction <add>, %121, %cst_67 [0] : vector<64x1xf32> to vector<1xf32>
      %123 = vector.shape_cast %122 : vector<1xf32> to vector<1x1xf32>
      %cst_68 = arith.constant 1.562500e-02 : f32
      %124 = vector.broadcast %cst_68 : f32 to vector<1x1xf32>
      %125 = arith.mulf %123, %124 : vector<1x1xf32>
      %c0_69 = arith.constant 0 : index
      %c0_70 = arith.constant 0 : index
      %126 = vector.load %arg13[%c0_69, %c0_70] : memref<1x1xf32, #tpu.memory_space<vmem>>, vector<1x1xf32>
      %cst_71 = arith.constant 1.562500e-02 : f32
      %127 = vector.broadcast %cst_71 : f32 to vector<1x1xf32>
      %128 = arith.mulf %126, %127 : vector<1x1xf32>
      %129 = arith.maximumf %125, %128 : vector<1x1xf32>
      %c0_72 = arith.constant 0 : index
      %c0_73 = arith.constant 0 : index
      %130 = vector.load %arg9[%c0_72, %c0_73] : memref<1x1xf32, #tpu.memory_space<vmem>>, vector<1x1xf32>
      tpu.vector_store %arg9[%c0_72, %c0_73], %129 {strides = array<i32>} : memref<1x1xf32, #tpu.memory_space<vmem>>, vector<1x1xf32>,
      %cst_74 = arith.constant dense<0.000000e+00> : vector<8xf32>
      %131 = vector.multi_reduction <add>, %3, %cst_74 [0] : vector<64x8xf32> to vector<8xf32>
      %132 = vector.shape_cast %131 : vector<8xf32> to vector<1x8xf32>
      %cst_75 = arith.constant 1.562500e-02 : f32
      %133 = vector.broadcast %cst_75 : f32 to vector<1x8xf32>
      %134 = arith.mulf %132, %133 : vector<1x8xf32>
      %135 = vector.broadcast %134 : vector<1x8xf32> to vector<64x8xf32>
      %136 = arith.subf %3, %135 : vector<64x8xf32>
      %cst_76 = arith.constant dense<0.000000e+00> : vector<8x8xf32>
      %137 = tpu.matmul %136, %136, %cst_76 {dimension_numbers = #tpu.dot_dimension_numbers<[0], [0], [1], [1], [0, 1, 1, 1], [], []>} : vector<64x8xf32>, vector<64x8xf32>, vector<8x8xf32> -> vector<8x8xf32>
      %cst_77 = arith.constant 0.0158730168 : f32
      %138 = vector.broadcast %cst_77 : f32 to vector<8x8xf32>
      %139 = arith.mulf %137, %138 : vector<8x8xf32>
      %c0_78 = arith.constant 0 : index
      %c0_79 = arith.constant 0 : index
      %140 = vector.load %arg14[%c0_78, %c0_79] : memref<8x1xf32, #tpu.memory_space<vmem>>, vector<8x1xf32>
      %cst_80 = arith.constant 1.562500e-02 : f32
      %141 = vector.broadcast %cst_80 : f32 to vector<8x1xf32>
      %142 = arith.mulf %140, %141 : vector<8x1xf32>
      %c0_81 = arith.constant 0 : index
      %c0_82 = arith.constant 0 : index
      %143 = vector.load %arg15[%c0_81, %c0_82] : memref<8x8xf32, #tpu.memory_space<vmem>>, vector<8x8xf32>
      %144 = tpu.transpose %142, [1, 0] : vector<8x1xf32> -> vector<1x8xf32>
      %145 = vector.broadcast %142 : vector<8x1xf32> to vector<8x8xf32>
      %146 = vector.broadcast %144 : vector<1x8xf32> to vector<8x8xf32>
      %147 = arith.mulf %145, %146 : vector<8x8xf32>
      %cst_83 = arith.constant 6.400000e+01 : f32
      %148 = vector.broadcast %cst_83 : f32 to vector<8x8xf32>
      %149 = arith.mulf %148, %147 : vector<8x8xf32>
      %150 = arith.subf %143, %149 : vector<8x8xf32>
      %cst_84 = arith.constant 0.0158730168 : f32
      %151 = vector.broadcast %cst_84 : f32 to vector<8x8xf32>
      %152 = arith.mulf %150, %151 : vector<8x8xf32>
      %153 = tpu.transpose %142, [1, 0] : vector<8x1xf32> -> vector<1x8xf32>
      %154 = arith.subf %134, %153 : vector<1x8xf32>
      %155 = math.absf %154 : vector<1x8xf32>
      %cst_85 = arith.constant dense<0.000000e+00> : vector<1xf32>
      %156 = vector.multi_reduction <add>, %155, %cst_85 [1] : vector<1x8xf32> to vector<1xf32>
      %157 = vector.shape_cast %156 : vector<1xf32> to vector<1x1xf32>
      %cst_86 = arith.constant dense<0.000000e+00> : vector<1xf32>
      %158 = vector.multi_reduction <add>, %157, %cst_86 [0] : vector<1x1xf32> to vector<1xf32>
      %159 = vector.shape_cast %158 : vector<1xf32> to vector<1x1xf32>
      %cst_87 = arith.constant 1.250000e-01 : f32
      %160 = vector.broadcast %cst_87 : f32 to vector<1x1xf32>
      %161 = arith.mulf %159, %160 : vector<1x1xf32>
      %162 = arith.subf %139, %152 : vector<8x8xf32>
      %163 = math.absf %162 : vector<8x8xf32>
      %cst_88 = arith.constant dense<0.000000e+00> : vector<8xf32>
      %164 = vector.multi_reduction <add>, %163, %cst_88 [1] : vector<8x8xf32> to vector<8xf32>
      %165 = vector.shape_cast %164 : vector<8xf32> to vector<8x1xf32>
      %cst_89 = arith.constant dense<0.000000e+00> : vector<1xf32>
      %166 = vector.multi_reduction <add>, %165, %cst_89 [0] : vector<8x1xf32> to vector<1xf32>
      %167 = vector.shape_cast %166 : vector<1xf32> to vector<1x1xf32>
      %cst_90 = arith.constant 1.562500e-02 : f32
      %168 = vector.broadcast %cst_90 : f32 to vector<1x1xf32>
      %169 = arith.mulf %167, %168 : vector<1x1xf32>
      %170 = arith.addf %161, %169 : vector<1x1xf32>
      %c0_91 = arith.constant 0 : index
      %c0_92 = arith.constant 0 : index
      %171 = vector.load %arg7[%c0_91, %c0_92] : memref<1x1xf32, #tpu.memory_space<vmem>>, vector<1x1xf32>
      tpu.vector_store %arg7[%c0_91, %c0_92], %170 {strides = array<i32>} : memref<1x1xf32, #tpu.memory_space<vmem>>, vector<1x1xf32>,
      %c0_93 = arith.constant 0 : index
      %c0_94 = arith.constant 0 : index
      %172 = vector.load %arg2[%c0_93, %c0_94] : memref<64x8xf32, #tpu.memory_space<vmem>>, vector<64x8xf32>
      %cst_95 = arith.constant 9.99999996E-13 : f32
      %173 = vector.broadcast %cst_95 : f32 to vector<64x1xf32>
      %174 = arith.addf %7, %173 : vector<64x1xf32>
      %175 = math.rsqrt %174 : vector<64x1xf32>
      %176 = arith.mulf %172, %172 : vector<64x8xf32>
      %cst_96 = arith.constant dense<0.000000e+00> : vector<64xf32>
      %177 = vector.multi_reduction <add>, %176, %cst_96 [1] : vector<64x8xf32> to vector<64xf32>
      %178 = vector.shape_cast %177 : vector<64xf32> to vector<64x1xf32>
      %cst_97 = arith.constant 9.99999996E-13 : f32
      %179 = vector.broadcast %cst_97 : f32 to vector<64x1xf32>
      %180 = arith.addf %178, %179 : vector<64x1xf32>
      %181 = math.rsqrt %180 : vector<64x1xf32>
      %cst_98 = arith.constant dense<0.000000e+00> : vector<64x64xf32>
      %182 = tpu.matmul %3, %3, %cst_98 {dimension_numbers = #tpu.dot_dimension_numbers<[1], [1], [0], [0], [0, 0, 1, 0], [], []>} : vector<64x8xf32>, vector<64x8xf32>, vector<64x64xf32> -> vector<64x64xf32>
      %cst_99 = arith.constant dense<0.000000e+00> : vector<64x64xf32>
      %183 = tpu.matmul %172, %172, %cst_99 {dimension_numbers = #tpu.dot_dimension_numbers<[1], [1], [0], [0], [0, 0, 1, 0], [], []>} : vector<64x8xf32>, vector<64x8xf32>, vector<64x64xf32> -> vector<64x64xf32>
      %184 = vector.broadcast %175 : vector<64x1xf32> to vector<64x64xf32>
      %185 = arith.mulf %182, %184 : vector<64x64xf32>
      %186 = tpu.transpose %175, [1, 0] : vector<64x1xf32> -> vector<1x64xf32>
      %187 = vector.broadcast %186 : vector<1x64xf32> to vector<64x64xf32>
      %188 = arith.mulf %185, %187 : vector<64x64xf32>
      %189 = vector.broadcast %181 : vector<64x1xf32> to vector<64x64xf32>
      %190 = arith.mulf %183, %189 : vector<64x64xf32>
      %191 = tpu.transpose %181, [1, 0] : vector<64x1xf32> -> vector<1x64xf32>
      %192 = vector.broadcast %191 : vector<1x64xf32> to vector<64x64xf32>
      %193 = arith.mulf %190, %192 : vector<64x64xf32>
      %194 = arith.subf %188, %193 : vector<64x64xf32>
      %195 = math.absf %194 : vector<64x64xf32>
      %cst_100 = arith.constant dense<0.000000e+00> : vector<64xf32>
      %196 = vector.multi_reduction <add>, %195, %cst_100 [1] : vector<64x64xf32> to vector<64xf32>
      %197 = vector.shape_cast %196 : vector<64xf32> to vector<64x1xf32>
      %cst_101 = arith.constant dense<0.000000e+00> : vector<1xf32>
      %198 = vector.multi_reduction <add>, %197, %cst_101 [0] : vector<64x1xf32> to vector<1xf32>
      %199 = vector.shape_cast %198 : vector<1xf32> to vector<1x1xf32>
      %cst_102 = arith.constant 2.44140625E-4 : f32
      %200 = vector.broadcast %cst_102 : f32 to vector<1x1xf32>
      %201 = arith.mulf %199, %200 : vector<1x1xf32>
      %c0_103 = arith.constant 0 : index
      %c0_104 = arith.constant 0 : index
      %202 = vector.load %arg6[%c0_103, %c0_104] : memref<1x1xf32, #tpu.memory_space<vmem>>, vector<1x1xf32>
      tpu.vector_store %arg6[%c0_103, %c0_104], %201 {strides = array<i32>} : memref<1x1xf32, #tpu.memory_space<vmem>>, vector<1x1xf32>,
    } else {
    }
    return
  }
  func.func @transform_0(%arg0: i32) -> (i32, i32) {
    %c0_i32 = arith.constant 0 : i32
    %c0_i32_0 = arith.constant 0 : i32
    %c0_i32_1 = arith.constant 0 : i32
    return %c0_i32, %c0_i32_0 : i32, i32
  }
  func.func @transform_1(%arg0: i32) -> (i32, i32) {
    %c0_i32 = arith.constant 0 : i32
    %c0_i32_0 = arith.constant 0 : i32
    %c0_i32_1 = arith.constant 0 : i32
    return %c0_i32, %c0_i32_0 : i32, i32
  }
  func.func @transform_2(%arg0: i32) -> (i32, i32) {
    %c0_i32 = arith.constant 0 : i32
    %c0_i32_0 = arith.constant 0 : i32
    return %c0_i32, %arg0 : i32, i32
  }
  func.func @transform_3(%arg0: i32) -> (i32, i32) {
    %c0_i32 = arith.constant 0 : i32
    %c0_i32_0 = arith.constant 0 : i32
    %c0_i32_1 = arith.constant 0 : i32
    return %c0_i32, %c0_i32_0 : i32, i32
  }
  func.func @transform_4(%arg0: i32) -> (i32, i32) {
    %c0_i32 = arith.constant 0 : i32
    %c0_i32_0 = arith.constant 0 : i32
    return %c0_i32, %arg0 : i32, i32
  }
  func.func @transform_5(%arg0: i32) -> (i32, i32) {
    %c0_i32 = arith.constant 0 : i32
    %c0_i32_0 = arith.constant 0 : i32
    %c0_i32_1 = arith.constant 0 : i32
    return %c0_i32, %c0_i32_0 : i32, i32
  }
  func.func @transform_6(%arg0: i32) -> (i32, i32) {
    %c0_i32 = arith.constant 0 : i32
    %c0_i32_0 = arith.constant 0 : i32
    %c0_i32_1 = arith.constant 0 : i32
    return %c0_i32, %c0_i32_0 : i32, i32
  }
  func.func @transform_7(%arg0: i32) -> (i32, i32) {
    %c0_i32 = arith.constant 0 : i32
    %c0_i32_0 = arith.constant 0 : i32
    %c0_i32_1 = arith.constant 0 : i32
    return %c0_i32, %c0_i32_0 : i32, i32
  }
  func.func @transform_8(%arg0: i32) -> (i32, i32) {
    %c0_i32 = arith.constant 0 : i32
    %c0_i32_0 = arith.constant 0 : i32
    %c0_i32_1 = arith.constant 0 : i32
    return %c0_i32, %c0_i32_0 : i32, i32
  }
}

</mosaic_0001>

<llo_original>
// kernel: style_loss_forward.1
$region0: #{style_loss_forward.1}
  #allocation0 [shape = 'u32[]', space=smem, size = 0x4, offset = 0x4, fixed_abs, tag = 'smem constant byte address 0x4 - core index']
  #allocation1 [shape = 'u32[72,128]{1,0:T(1,128)}', space=vmem, size = 0x9000, scoped, tag = 'internal scratch']
  #allocation2 [shape = 'f32[64,1]{1,0:T(8,128)}', space=vmem, size = 0x8000, scoped, tag = 'scratch operand']
  #allocation3 [shape = 'f32[64,1]{1,0:T(8,128)}', space=vmem, size = 0x8000, scoped, tag = 'scratch operand']
  #allocation4 [shape = 'f32[1,1]{1,0:T(1,128)}', space=vmem, size = 0x200, scoped, tag = 'scratch operand']
  #allocation5 [shape = 'f32[1,1]{1,0:T(1,128)}', space=vmem, size = 0x200, scoped, tag = 'scratch operand']
  #allocation6 [shape = 'f32[8,1]{1,0:T(8,128)}', space=vmem, size = 0x1000, scoped, tag = 'scratch operand']
  #allocation7 [shape = 'f32[8,8]{1,0:T(8,128)}', space=vmem, size = 0x1000, scoped, tag = 'scratch operand']
  %s0 = inlined_call_operand.vmem [shape: f32[64,8], index: 0, kind: input, shape index: {}]
  %s1 = inlined_call_operand.vmem [shape: f32[64,8], index: 1, kind: input, shape index: {}]
  %s2 = inlined_call_operand.vmem [shape: f32[8,64], index: 2, kind: input, shape index: {}]
  %s3 = inlined_call_operand.vmem [shape: f32[64,3], index: 3, kind: input, shape index: {}]
  %s4 = inlined_call_operand.vmem [shape: f32[3,64], index: 4, kind: input, shape index: {}]
  %s5 = inlined_call_operand.hbm [shape: f32[1,1], index: 5, kind: output, shape index: {0}]
  %s6 = inlined_call_operand.hbm [shape: f32[1,1], index: 6, kind: output, shape index: {1}]
  %s7 = inlined_call_operand.hbm [shape: f32[1,1], index: 7, kind: output, shape index: {2}]
  %s8 = inlined_call_operand.hbm [shape: f32[1,1], index: 8, kind: output, shape index: {3}]
  %9 = xla_tuple %s5, %s6, %s7, %s8
  %s10 = sld [smem:[#allocation0]]
  $region62: #{style_loss_forward.1} parent=0
    _
  %s12 = ssub.s32 1, %s10
  %s13 = scalar_select 0, %s12, %s10
  $region1: #{style_loss_forward.1} parent=0
    #allocation8 [shape = 'u8[512]{0}', space=vmem, size = 0x400, scoped, tag = 'output window, operand 0, single buffered']
    #allocation9 [shape = 's32[1]{0}', space=sflag, size = 0x4, scoped, tag = 'scoped memory for style_loss_forward.1']
    #allocation10 [shape = 'u8[512]{0}', space=vmem, size = 0x400, scoped, tag = 'output window, operand 1, single buffered']
    #allocation11 [shape = 's32[1]{0}', space=sflag, size = 0x4, scoped, tag = 'scoped memory for style_loss_forward.1']
    #allocation12 [shape = 'u8[512]{0}', space=vmem, size = 0x400, scoped, tag = 'output window, operand 2, single buffered']
    #allocation13 [shape = 'u8[512]{0}', space=vmem, size = 0x400, scoped, tag = 'output window, operand 3, single buffered']
    #allocation14 [shape = 's32[1]{0}', space=sflag, size = 0x4, scoped, tag = 'scoped memory for style_loss_forward.1']
    %14 = vsyncpa [#allocation9], 0
    %15 = vsyncpa [#allocation11], 0
    %16 = vsyncpa [#allocation14], 0
    // Predicated region
    $region2: #{style_loss_forward.1} parent=1 // pred_check
      _
    $region3: #{style_loss_forward.1} parent=1 // pred_check_branch
      %18 = sbr.rel (0) target = $region5
    $region4: #{style_loss_forward.1} parent=1 // pred_region
      _
    $region5: #{style_loss_forward.1} parent=1 // pred_fallthru
      _
    // Predicated region
    $region6: #{style_loss_forward.1} parent=1 // pred_check
      _
    $region7: #{style_loss_forward.1} parent=1 // pred_check_branch
      %20 = sbr.rel (0) target = $region9
    $region8: #{style_loss_forward.1} parent=1 // pred_region
      _
    $region9: #{style_loss_forward.1} parent=1 // pred_fallthru
      _
    // Predicated region
    $region10: #{style_loss_forward.1} parent=1 // pred_check
      _
    $region11: #{style_loss_forward.1} parent=1 // pred_check_branch
      %22 = sbr.rel (0) target = $region13
    $region12: #{style_loss_forward.1} parent=1 // pred_region
      _
    $region13: #{style_loss_forward.1} parent=1 // pred_fallthru
      _
    // Predicated region
    $region14: #{style_loss_forward.1} parent=1 // pred_check
      _
    $region15: #{style_loss_forward.1} parent=1 // pred_check_branch
      %24 = sbr.rel (0) target = $region17
    $region16: #{style_loss_forward.1} parent=1 // pred_region
      _
    $region17: #{style_loss_forward.1} parent=1 // pred_fallthru
      _
    // Predicated region
    $region18: #{style_loss_forward.1} parent=1 // pred_check
      _
    $region19: #{style_loss_forward.1} parent=1 // pred_check_branch
      %26 = sbr.rel (0) target = $region21
    $region20: #{style_loss_forward.1} parent=1 // pred_region
      _
    $region21: #{style_loss_forward.1} parent=1 // pred_fallthru
      _
    %p27 = scmp.eq.s32.totalorder 0, 0
    // Predicated region
    $region22: #{style_loss_forward.1} parent=1 // pred_check
      %p28 = pneg %p27
    $region23: #{style_loss_forward.1} parent=1 // pred_check_branch
      %30 = sbr.rel (%p28) target = $region25
    $region24: #{style_loss_forward.1} parent=1 // pred_region
      %vm31 = vcmask 7168
      %32 = vst.msk [vmem:[#allocation2] sm:$0xff] %vm31, inf
      %33 = vst.msk [vmem:[#allocation2 + $0x8] sm:$0xff] %vm31, inf
      %34 = vst.msk [vmem:[#allocation2 + $0x10] sm:$0xff] %vm31, inf
      %35 = vst.msk [vmem:[#allocation2 + $0x18] sm:$0xff] %vm31, inf
      %36 = vst.msk [vmem:[#allocation2 + $0x20] sm:$0xff] %vm31, inf
      %37 = vst.msk [vmem:[#allocation2 + $0x28] sm:$0xff] %vm31, inf
      %38 = vst.msk [vmem:[#allocation2 + $0x30] sm:$0xff] %vm31, inf
      %39 = vst.msk [vmem:[#allocation2 + $0x38] sm:$0xff] %vm31, inf
      %40 = vst.msk [vmem:[#allocation3] sm:$0xff] %vm31, inf
      %41 = vst.msk [vmem:[#allocation3 + $0x8] sm:$0xff] %vm31, inf
      %42 = vst.msk [vmem:[#allocation3 + $0x10] sm:$0xff] %vm31, inf
      %43 = vst.msk [vmem:[#allocation3 + $0x18] sm:$0xff] %vm31, inf
      %44 = vst.msk [vmem:[#allocation3 + $0x20] sm:$0xff] %vm31, inf
      %45 = vst.msk [vmem:[#allocation3 + $0x28] sm:$0xff] %vm31, inf
      %46 = vst.msk [vmem:[#allocation3 + $0x30] sm:$0xff] %vm31, inf
      %47 = vst.msk [vmem:[#allocation3 + $0x38] sm:$0xff] %vm31, inf
      %vm48 = vcmask 0
      %49 = vst.msk [vmem:[#allocation4] sm:$0x1] %vm48, 0.0
      %50 = vst.msk [vmem:[#allocation5] sm:$0x1] %vm48, 0.0
      %51 = vst.msk [vmem:[#allocation6] sm:$0xff] %vm31, 0.0
      %vm52 = vcmask 64512
      %53 = vst.msk [vmem:[#allocation7] sm:$0xff] %vm52, 0.0
    $region25: #{style_loss_forward.1} parent=1 // pred_fallthru
      _
    %v54 = vld [vmem:[%s0] sm:$0xff]
    %v55 = vld [vmem:[%s0 + $0x8] sm:$0xff]
    %v56 = vld [vmem:[%s0 + $0x10] sm:$0xff]
    %v57 = vld [vmem:[%s0 + $0x18] sm:$0xff]
    %v58 = vld [vmem:[%s0 + $0x20] sm:$0xff]
    %v59 = vld [vmem:[%s0 + $0x28] sm:$0xff]
    %v60 = vld [vmem:[%s0 + $0x30] sm:$0xff]
    %v61 = vld [vmem:[%s0 + $0x38] sm:$0xff]
    %v62 = vld [vmem:[%s2] sm:$0xff]
    %v63 = vmul.f32 %v54, %v54
    %v64 = vmul.f32 %v55, %v55
    %v65 = vmul.f32 %v56, %v56
    %v66 = vmul.f32 %v57, %v57
    %v67 = vmul.f32 %v58, %v58
    %v68 = vmul.f32 %v59, %v59
    %v69 = vmul.f32 %v60, %v60
    %v70 = vmul.f32 %v61, %v61
    %vm71 = vcmask 64512
    %v72 = vsel %vm71, %v63, 0.0
    %73 = vadd.xlane.f32.xlu0 %v72
    %v74 = vpop.xlane.xlu0 %73
    %v75 = vsel %vm71, %v64, 0.0
    %76 = vadd.xlane.f32.xlu0 %v75
    %v77 = vpop.xlane.xlu0 %76
    %v78 = vsel %vm71, %v65, 0.0
    %79 = vadd.xlane.f32.xlu0 %v78
    %v80 = vpop.xlane.xlu0 %79
    %v81 = vsel %vm71, %v66, 0.0
    %82 = vadd.xlane.f32.xlu0 %v81
    %v83 = vpop.xlane.xlu0 %82
    %v84 = vsel %vm71, %v67, 0.0
    %85 = vadd.xlane.f32.xlu0 %v84
    %v86 = vpop.xlane.xlu0 %85
    %v87 = vsel %vm71, %v68, 0.0
    %88 = vadd.xlane.f32.xlu0 %v87
    %v89 = vpop.xlane.xlu0 %88
    %v90 = vsel %vm71, %v69, 0.0
    %91 = vadd.xlane.f32.xlu0 %v90
    %v92 = vpop.xlane.xlu0 %91
    %v93 = vsel %vm71, %v70, 0.0
    %94 = vadd.xlane.f32.xlu0 %v93
    %v95 = vpop.xlane.xlu0 %94
    %v96 = vmul.f32 %v62, %v62
    %vm97 = vcmask 523264
    %v98 = vsel %vm97, %v96, 0.0
    %v99 = vrot.slane %v98, 4
    %v100 = vadd.f32 %v98, %v99
    %v101 = vrot.slane %v100, 2
    %v102 = vadd.f32 %v100, %v101
    %v103 = vrot.slane %v102, 1
    %v104 = vadd.f32 %v102, %v103
    %v106 = vsel %vm71, %v54, 0
    %v109 = vsel %vm71, %v55, 0
    %v112 = vsel %vm71, %v56, 0
    %v115 = vsel %vm71, %v57, 0
    %v118 = vsel %vm71, %v58, 0
    %v121 = vsel %vm71, %v59, 0
    %v124 = vsel %vm71, %v60, 0
    %v127 = vsel %vm71, %v61, 0
    %129 = vmatpush.msra.mxu0 0.0
    %130 = vmatpush.msra.mxu0 0.0
    %131 = vmatpush.msra.mxu0 0.0
    %132 = vmatpush.msra.mxu0 0.0
    %133 = vmatpush.msra.mxu0 0.0
    %134 = vmatpush.msra.mxu0 0.0
    %135 = vmatpush.msra.mxu0 0.0
    %136 = vmatpush.msra.mxu0 0.0
    %137 = vmatpush.msra.mxu0 0.0
    %138 = vmatpush.msra.mxu0 0.0
    %139 = vmatpush.msra.mxu0 0.0
    %140 = vmatpush.msra.mxu0 0.0
    %141 = vmatpush.msra.mxu0 0.0
    %142 = vmatpush.msra.mxu0 0.0
    %143 = vmatpush.msra.mxu0 0.0
    %144 = vmatpush.msra.mxu0 %v62
    %145 = vmatmul.f32.gmra.mxu0 %v106
    %v146 = vpop.f32.mrf.mxu0
    %v147 = vadd.f32 0.0, %v146
    %148 = vmatmul.f32.gmra.mxu0 %v109
    %v149 = vpop.f32.mrf.mxu0
    %v150 = vadd.f32 0.0, %v149
    %151 = vmatmul.f32.gmra.mxu0 %v112
    %v152 = vpop.f32.mrf.mxu0
    %v153 = vadd.f32 0.0, %v152
    %154 = vmatmul.f32.gmra.mxu0 %v115
    %v155 = vpop.f32.mrf.mxu0
    %v156 = vadd.f32 0.0, %v155
    %157 = vmatmul.f32.gmra.mxu0 %v118
    %v158 = vpop.f32.mrf.mxu0
    %v159 = vadd.f32 0.0, %v158
    %160 = vmatmul.f32.gmra.mxu0 %v121
    %v161 = vpop.f32.mrf.mxu0
    %v162 = vadd.f32 0.0, %v161
    %163 = vmatmul.f32.gmra.mxu0 %v124
    %v164 = vpop.f32.mrf.mxu0
    %v165 = vadd.f32 0.0, %v164
    %166 = vmatmul.f32.gmra.mxu0 %v127
    %v167 = vpop.f32.mrf.mxu0
    %v168 = vadd.f32 0.0, %v167
    %169 = vdwg.mxu0
    %v170 = vadd.f32 %v74, 1e-12
    %v171 = vadd.f32 %v77, 1e-12
    %v172 = vadd.f32 %v80, 1e-12
    %v173 = vadd.f32 %v83, 1e-12
    %v174 = vadd.f32 %v86, 1e-12
    %v175 = vadd.f32 %v89, 1e-12
    %v176 = vadd.f32 %v92, 1e-12
    %v177 = vadd.f32 %v95, 1e-12
    %v178 = vrsqrt.pop %v170
    %v179 = vmul.f32 %v178, %v170
    %v180 = vmul.f32 %v179, %v178
    %v181 = vmul.f32 0.5, %v180
    %v182 = vsub.f32 1.5, %v181
    %v183 = vmul.f32 %v178, %v182
    %vm184 = vweird.f32 %v170
    %vm185 = vweird.f32 %v178
    %vm186 = vmor %vm184, %vm185
    %v187 = vsel %vm186, %v178, %v183
    %v188 = vrsqrt.pop %v171
    %v189 = vmul.f32 %v188, %v171
    %v190 = vmul.f32 %v189, %v188
    %v191 = vmul.f32 0.5, %v190
    %v192 = vsub.f32 1.5, %v191
    %v193 = vmul.f32 %v188, %v192
    %vm194 = vweird.f32 %v171
    %vm195 = vweird.f32 %v188
    %vm196 = vmor %vm194, %vm195
    %v197 = vsel %vm196, %v188, %v193
    %v198 = vrsqrt.pop %v172
    %v199 = vmul.f32 %v198, %v172
    %v200 = vmul.f32 %v199, %v198
    %v201 = vmul.f32 0.5, %v200
    %v202 = vsub.f32 1.5, %v201
    %v203 = vmul.f32 %v198, %v202
    %vm204 = vweird.f32 %v172
    %vm205 = vweird.f32 %v198
    %vm206 = vmor %vm204, %vm205
    %v207 = vsel %vm206, %v198, %v203
    %v208 = vrsqrt.pop %v173
    %v209 = vmul.f32 %v208, %v173
    %v210 = vmul.f32 %v209, %v208
    %v211 = vmul.f32 0.5, %v210
    %v212 = vsub.f32 1.5, %v211
    %v213 = vmul.f32 %v208, %v212
    %vm214 = vweird.f32 %v173
    %vm215 = vweird.f32 %v208
    %vm216 = vmor %vm214, %vm215
    %v217 = vsel %vm216, %v208, %v213
    %v218 = vrsqrt.pop %v174
    %v219 = vmul.f32 %v218, %v174
    %v220 = vmul.f32 %v219, %v218
    %v221 = vmul.f32 0.5, %v220
    %v222 = vsub.f32 1.5, %v221
    %v223 = vmul.f32 %v218, %v222
    %vm224 = vweird.f32 %v174
    %vm225 = vweird.f32 %v218
    %vm226 = vmor %vm224, %vm225
    %v227 = vsel %vm226, %v218, %v223
    %v228 = vrsqrt.pop %v175
    %v229 = vmul.f32 %v228, %v175
    %v230 = vmul.f32 %v229, %v228
    %v231 = vmul.f32 0.5, %v230
    %v232 = vsub.f32 1.5, %v231
    %v233 = vmul.f32 %v228, %v232
    %vm234 = vweird.f32 %v175
    %vm235 = vweird.f32 %v228
    %vm236 = vmor %vm234, %vm235
    %v237 = vsel %vm236, %v228, %v233
    %v238 = vrsqrt.pop %v176
    %v239 = vmul.f32 %v238, %v176
    %v240 = vmul.f32 %v239, %v238
    %v241 = vmul.f32 0.5, %v240
    %v242 = vsub.f32 1.5, %v241
    %v243 = vmul.f32 %v238, %v242
    %vm244 = vweird.f32 %v176
    %vm245 = vweird.f32 %v238
    %vm246 = vmor %vm244, %vm245
    %v247 = vsel %vm246, %v238, %v243
    %v248 = vrsqrt.pop %v177
    %v249 = vmul.f32 %v248, %v177
    %v250 = vmul.f32 %v249, %v248
    %v251 = vmul.f32 0.5, %v250
    %v252 = vsub.f32 1.5, %v251
    %v253 = vmul.f32 %v248, %v252
    %vm254 = vweird.f32 %v177
    %vm255 = vweird.f32 %v248
    %vm256 = vmor %vm254, %vm255
    %v257 = vsel %vm256, %v248, %v253
    %v258 = vmul.f32 %v147, %v187
    %v259 = vmul.f32 %v150, %v197
    %v260 = vmul.f32 %v153, %v207
    %v261 = vmul.f32 %v156, %v217
    %v262 = vmul.f32 %v159, %v227
    %v263 = vmul.f32 %v162, %v237
    %v264 = vmul.f32 %v165, %v247
    %v265 = vmul.f32 %v168, %v257
    %v266 = vadd.f32 %v104, 1e-12
    %v267 = vrsqrt.pop %v266
    %v268 = vmul.f32 %v267, %v266
    %v269 = vmul.f32 %v268, %v267
    %v270 = vmul.f32 0.5, %v269
    %v271 = vsub.f32 1.5, %v270
    %v272 = vmul.f32 %v267, %v271
    %vm273 = vweird.f32 %v266
    %vm274 = vweird.f32 %v267
    %vm275 = vmor %vm273, %vm274
    %v276 = vsel %vm275, %v267, %v272
    %v277 = vmul.f32 %v258, %v276
    %v278 = vmul.f32 %v259, %v276
    %v279 = vmul.f32 %v260, %v276
    %v280 = vmul.f32 %v261, %v276
    %v281 = vmul.f32 %v262, %v276
    %v282 = vmul.f32 %v263, %v276
    %v283 = vmul.f32 %v264, %v276
    %v284 = vmul.f32 %v265, %v276
    %v285 = vsub.f32 1.0, %v277
    %v286 = vsub.f32 1.0, %v278
    %v287 = vsub.f32 1.0, %v279
    %v288 = vsub.f32 1.0, %v280
    %v289 = vsub.f32 1.0, %v281
    %v290 = vsub.f32 1.0, %v282
    %v291 = vsub.f32 1.0, %v283
    %v292 = vsub.f32 1.0, %v284
    %v293 = vld [vmem:[#allocation2] sm:$0xff]
    %v294 = vld [vmem:[#allocation2 + $0x8] sm:$0xff]
    %v295 = vld [vmem:[#allocation2 + $0x10] sm:$0xff]
    %v296 = vld [vmem:[#allocation2 + $0x18] sm:$0xff]
    %v297 = vld [vmem:[#allocation2 + $0x20] sm:$0xff]
    %v298 = vld [vmem:[#allocation2 + $0x28] sm:$0xff]
    %v299 = vld [vmem:[#allocation2 + $0x30] sm:$0xff]
    %v300 = vld [vmem:[#allocation2 + $0x38] sm:$0xff]
    %v301 = vsel %vm97, %v285, inf
    %302 = vmin.xlane.f32.xlu0 %v301
    %v303 = vpop.xlane.xlu0 %302
    %v304 = vsel %vm97, %v286, inf
    %305 = vmin.xlane.f32.xlu0 %v304
    %v306 = vpop.xlane.xlu0 %305
    %v307 = vsel %vm97, %v287, inf
    %308 = vmin.xlane.f32.xlu0 %v307
    %v309 = vpop.xlane.xlu0 %308
    %v310 = vsel %vm97, %v288, inf
    %311 = vmin.xlane.f32.xlu0 %v310
    %v312 = vpop.xlane.xlu0 %311
    %v313 = vsel %vm97, %v289, inf
    %314 = vmin.xlane.f32.xlu0 %v313
    %v315 = vpop.xlane.xlu0 %314
    %v316 = vsel %vm97, %v290, inf
    %317 = vmin.xlane.f32.xlu0 %v316
    %v318 = vpop.xlane.xlu0 %317
    %v319 = vsel %vm97, %v291, inf
    %320 = vmin.xlane.f32.xlu0 %v319
    %v321 = vpop.xlane.xlu0 %320
    %v322 = vsel %vm97, %v292, inf
    %323 = vmin.xlane.f32.xlu0 %v322
    %v324 = vpop.xlane.xlu0 %323
    %v325 = vmin.f32 %v293, %v303
    %v326 = vmin.f32 %v294, %v306
    %v327 = vmin.f32 %v295, %v309
    %v328 = vmin.f32 %v296, %v312
    %v329 = vmin.f32 %v297, %v315
    %v330 = vmin.f32 %v298, %v318
    %v331 = vmin.f32 %v299, %v321
    %v332 = vmin.f32 %v300, %v324
    %vm333 = vcmask 7168
    %334 = vst.msk [vmem:[#allocation2] sm:$0xff] %vm333, %v325
    %335 = vst.msk [vmem:[#allocation2 + $0x8] sm:$0xff] %vm333, %v326
    %336 = vst.msk [vmem:[#allocation2 + $0x10] sm:$0xff] %vm333, %v327
    %337 = vst.msk [vmem:[#allocation2 + $0x18] sm:$0xff] %vm333, %v328
    %338 = vst.msk [vmem:[#allocation2 + $0x20] sm:$0xff] %vm333, %v329
    %339 = vst.msk [vmem:[#allocation2 + $0x28] sm:$0xff] %vm333, %v330
    %340 = vst.msk [vmem:[#allocation2 + $0x30] sm:$0xff] %vm333, %v331
    %341 = vst.msk [vmem:[#allocation2 + $0x38] sm:$0xff] %vm333, %v332
    %v342 = vmin.f32 %v301, %v313
    %v343 = vmin.f32 %v304, %v316
    %v344 = vmin.f32 %v307, %v319
    %v345 = vmin.f32 %v310, %v322
    %v346 = vmin.f32 %v342, %v343
    %v347 = vmin.f32 %v344, %v345
    %v348 = vmin.f32 %v346, %v347
    %v349 = vrot.slane %v348, 4
    %v350 = vmin.f32 %v348, %v349
    %v351 = vrot.slane %v350, 2
    %v352 = vmin.f32 %v350, %v351
    %v353 = vrot.slane %v352, 1
    %v354 = vmin.f32 %v352, %v353
    %v355 = vld [vmem:[#allocation4] sm:$0x1]
    %v356 = vsel %vm97, %v354, 0.0
    %357 = vadd.xlane.f32.xlu0 %v356
    %v358 = vpop.xlane.xlu0 %357
    %v359 = vadd.f32 %v355, %v358
    %vm360 = vcmask 0
    %361 = vst.msk [vmem:[#allocation4] sm:$0x1] %vm360, %v359
    %v362 = vld [vmem:[#allocation6] sm:$0xff]
    %v363 = vsel %vm97, %v62, 0.0
    %364 = vadd.xlane.f32.xlu0 %v363
    %v365 = vpop.xlane.xlu0 %364
    %v366 = vadd.f32 %v362, %v365
    %367 = vst.msk [vmem:[#allocation6] sm:$0xff] %vm333, %v366
    %v368 = vld [vmem:[#allocation7] sm:$0xff]
    %v370 = vsel %vm97, %v62, 0
    %372 = vmatpush.xpose.msra.mxu0 0.0
    %373 = vmatpush.xpose.msra.mxu0 0.0
    %374 = vmatpush.xpose.msra.mxu0 0.0
    %375 = vmatpush.xpose.msra.mxu0 0.0
    %376 = vmatpush.xpose.msra.mxu0 0.0
    %377 = vmatpush.xpose.msra.mxu0 0.0
    %378 = vmatpush.xpose.msra.mxu0 0.0
    %379 = vmatpush.xpose.msra.mxu0 0.0
    %380 = vmatpush.xpose.msra.mxu0 0.0
    %381 = vmatpush.xpose.msra.mxu0 0.0
    %382 = vmatpush.xpose.msra.mxu0 0.0
    %383 = vmatpush.xpose.msra.mxu0 0.0
    %384 = vmatpush.xpose.msra.mxu0 0.0
    %385 = vmatpush.xpose.msra.mxu0 0.0
    %386 = vmatpush.xpose.msra.mxu0 0.0
    %387 = vmatpush.xpose.msra.mxu0 %v370
    %388 = vmatmul.f32.gmra.mxu0 %v370
    %v389 = vpop.f32.mrf.mxu0
    %v390 = vadd.f32 0.0, %v389
    %391 = vdwg.mxu0
    %v392 = vadd.f32 %v368, %v390
    %393 = vst.msk [vmem:[#allocation7] sm:$0xff] %vm71, %v392
    %v394 = vld [vmem:[%s3] sm:$0xff]
    %v395 = vld [vmem:[%s3 + $0x8] sm:$0xff]
    %v396 = vld [vmem:[%s3 + $0x10] sm:$0xff]
    %v397 = vld [vmem:[%s3 + $0x18] sm:$0xff]
    %v398 = vld [vmem:[%s3 + $0x20] sm:$0xff]
    %v399 = vld [vmem:[%s3 + $0x28] sm:$0xff]
    %v400 = vld [vmem:[%s3 + $0x30] sm:$0xff]
    %v401 = vld [vmem:[%s3 + $0x38] sm:$0xff]
    %v402 = vld [vmem:[%s4] sm:$0x7]
    %v403 = vmul.f32 %v394, %v394
    %v404 = vmul.f32 %v395, %v395
    %v405 = vmul.f32 %v396, %v396
    %v406 = vmul.f32 %v397, %v397
    %v407 = vmul.f32 %v398, %v398
    %v408 = vmul.f32 %v399, %v399
    %v409 = vmul.f32 %v400, %v400
    %v410 = vmul.f32 %v401, %v401
    %vm411 = vcmask 23552
    %v412 = vsel %vm411, %v403, 0.0
    %413 = vadd.xlane.f32.xlu0 %v412
    %v414 = vpop.xlane.xlu0 %413
    %v415 = vsel %vm411, %v404, 0.0
    %416 = vadd.xlane.f32.xlu0 %v415
    %v417 = vpop.xlane.xlu0 %416
    %v418 = vsel %vm411, %v405, 0.0
    %419 = vadd.xlane.f32.xlu0 %v418
    %v420 = vpop.xlane.xlu0 %419
    %v421 = vsel %vm411, %v406, 0.0
    %422 = vadd.xlane.f32.xlu0 %v421
    %v423 = vpop.xlane.xlu0 %422
    %v424 = vsel %vm411, %v407, 0.0
    %425 = vadd.xlane.f32.xlu0 %v424
    %v426 = vpop.xlane.xlu0 %425
    %v427 = vsel %vm411, %v408, 0.0
    %428 = vadd.xlane.f32.xlu0 %v427
    %v429 = vpop.xlane.xlu0 %428
    %v430 = vsel %vm411, %v409, 0.0
    %431 = vadd.xlane.f32.xlu0 %v430
    %v432 = vpop.xlane.xlu0 %431
    %v433 = vsel %vm411, %v410, 0.0
    %434 = vadd.xlane.f32.xlu0 %v433
    %v435 = vpop.xlane.xlu0 %434
    %v436 = vmul.f32 %v402, %v402
    %vm437 = vcmask 518144
    %v438 = vsel %vm437, %v436, 0.0
    %v439 = vrot.slane %v438, 4
    %v440 = vadd.f32 %v438, %v439
    %v441 = vrot.slane %v440, 2
    %v442 = vadd.f32 %v440, %v441
    %v443 = vrot.slane %v442, 1
    %v444 = vadd.f32 %v442, %v443
    %446 = vset.pattern.permute.xlu0 0
    %447 = vperm.xlu0 %446, %v394
    %v448 = vpop.permute.xlu0 %447
    %451 = vset.pattern.permute.xlu0 0
    %452 = vperm.xlu0 %451, %v395
    %v453 = vpop.permute.xlu0 %452
    %456 = vset.pattern.permute.xlu0 0
    %457 = vperm.xlu0 %456, %v396
    %v458 = vpop.permute.xlu0 %457
    %461 = vset.pattern.permute.xlu0 0
    %462 = vperm.xlu0 %461, %v397
    %v463 = vpop.permute.xlu0 %462
    %466 = vset.pattern.permute.xlu0 0
    %467 = vperm.xlu0 %466, %v398
    %v468 = vpop.permute.xlu0 %467
    %471 = vset.pattern.permute.xlu0 0
    %472 = vperm.xlu0 %471, %v399
    %v473 = vpop.permute.xlu0 %472
    %476 = vset.pattern.permute.xlu0 0
    %477 = vperm.xlu0 %476, %v400
    %v478 = vpop.permute.xlu0 %477
    %481 = vset.pattern.permute.xlu0 0
    %482 = vperm.xlu0 %481, %v401
    %v483 = vpop.permute.xlu0 %482
    %v485 = vperm.slane %v402, 0
    %v486 = vmul.f32 %v448, %v485
    %v487 = vmul.f32 %v453, %v485
    %v488 = vmul.f32 %v458, %v485
    %v489 = vmul.f32 %v463, %v485
    %v490 = vmul.f32 %v468, %v485
    %v491 = vmul.f32 %v473, %v485
    %v492 = vmul.f32 %v478, %v485
    %v493 = vmul.f32 %v483, %v485
    %494 = vset.pattern.permute.xlu0 1
    %495 = vperm.xlu0 %494, %v394
    %v496 = vpop.permute.xlu0 %495
    %498 = vset.pattern.permute.xlu0 1
    %499 = vperm.xlu0 %498, %v395
    %v500 = vpop.permute.xlu0 %499
    %502 = vset.pattern.permute.xlu0 1
    %503 = vperm.xlu0 %502, %v396
    %v504 = vpop.permute.xlu0 %503
    %506 = vset.pattern.permute.xlu0 1
    %507 = vperm.xlu0 %506, %v397
    %v508 = vpop.permute.xlu0 %507
    %510 = vset.pattern.permute.xlu0 1
    %511 = vperm.xlu0 %510, %v398
    %v512 = vpop.permute.xlu0 %511
    %514 = vset.pattern.permute.xlu0 1
    %515 = vperm.xlu0 %514, %v399
    %v516 = vpop.permute.xlu0 %515
    %518 = vset.pattern.permute.xlu0 1
    %519 = vperm.xlu0 %518, %v400
    %v520 = vpop.permute.xlu0 %519
    %522 = vset.pattern.permute.xlu0 1
    %523 = vperm.xlu0 %522, %v401
    %v524 = vpop.permute.xlu0 %523
    %v526 = vperm.slane %v402, 1
    %v527 = vmul.f32 %v496, %v526
    %v528 = vmul.f32 %v500, %v526
    %v529 = vmul.f32 %v504, %v526
    %v530 = vmul.f32 %v508, %v526
    %v531 = vmul.f32 %v512, %v526
    %v532 = vmul.f32 %v516, %v526
    %v533 = vmul.f32 %v520, %v526
    %v534 = vmul.f32 %v524, %v526
    %v535 = vadd.f32 %v486, %v527
    %v536 = vadd.f32 %v487, %v528
    %v537 = vadd.f32 %v488, %v529
    %v538 = vadd.f32 %v489, %v530
    %v539 = vadd.f32 %v490, %v531
    %v540 = vadd.f32 %v491, %v532
    %v541 = vadd.f32 %v492, %v533
    %v542 = vadd.f32 %v493, %v534
    %543 = vset.pattern.permute.xlu0 2
    %544 = vperm.xlu0 %543, %v394
    %v545 = vpop.permute.xlu0 %544
    %547 = vset.pattern.permute.xlu0 2
    %548 = vperm.xlu0 %547, %v395
    %v549 = vpop.permute.xlu0 %548
    %551 = vset.pattern.permute.xlu0 2
    %552 = vperm.xlu0 %551, %v396
    %v553 = vpop.permute.xlu0 %552
    %555 = vset.pattern.permute.xlu0 2
    %556 = vperm.xlu0 %555, %v397
    %v557 = vpop.permute.xlu0 %556
    %559 = vset.pattern.permute.xlu0 2
    %560 = vperm.xlu0 %559, %v398
    %v561 = vpop.permute.xlu0 %560
    %563 = vset.pattern.permute.xlu0 2
    %564 = vperm.xlu0 %563, %v399
    %v565 = vpop.permute.xlu0 %564
    %567 = vset.pattern.permute.xlu0 2
    %568 = vperm.xlu0 %567, %v400
    %v569 = vpop.permute.xlu0 %568
    %571 = vset.pattern.permute.xlu0 2
    %572 = vperm.xlu0 %571, %v401
    %v573 = vpop.permute.xlu0 %572
    %v575 = vperm.slane %v402, 2
    %v576 = vmul.f32 %v545, %v575
    %v577 = vmul.f32 %v549, %v575
    %v578 = vmul.f32 %v553, %v575
    %v579 = vmul.f32 %v557, %v575
    %v580 = vmul.f32 %v561, %v575
    %v581 = vmul.f32 %v565, %v575
    %v582 = vmul.f32 %v569, %v575
    %v583 = vmul.f32 %v573, %v575
    %v584 = vadd.f32 %v535, %v576
    %v585 = vadd.f32 %v536, %v577
    %v586 = vadd.f32 %v537, %v578
    %v587 = vadd.f32 %v538, %v579
    %v588 = vadd.f32 %v539, %v580
    %v589 = vadd.f32 %v540, %v581
    %v590 = vadd.f32 %v541, %v582
    %v591 = vadd.f32 %v542, %v583
    %v592 = vadd.f32 %v414, 1e-12
    %v593 = vadd.f32 %v417, 1e-12
    %v594 = vadd.f32 %v420, 1e-12
    %v595 = vadd.f32 %v423, 1e-12
    %v596 = vadd.f32 %v426, 1e-12
    %v597 = vadd.f32 %v429, 1e-12
    %v598 = vadd.f32 %v432, 1e-12
    %v599 = vadd.f32 %v435, 1e-12
    %v600 = vrsqrt.pop %v592
    %v601 = vmul.f32 %v600, %v592
    %v602 = vmul.f32 %v601, %v600
    %v603 = vmul.f32 0.5, %v602
    %v604 = vsub.f32 1.5, %v603
    %v605 = vmul.f32 %v600, %v604
    %vm606 = vweird.f32 %v592
    %vm607 = vweird.f32 %v600
    %vm608 = vmor %vm606, %vm607
    %v609 = vsel %vm608, %v600, %v605
    %v610 = vrsqrt.pop %v593
    %v611 = vmul.f32 %v610, %v593
    %v612 = vmul.f32 %v611, %v610
    %v613 = vmul.f32 0.5, %v612
    %v614 = vsub.f32 1.5, %v613
    %v615 = vmul.f32 %v610, %v614
    %vm616 = vweird.f32 %v593
    %vm617 = vweird.f32 %v610
    %vm618 = vmor %vm616, %vm617
    %v619 = vsel %vm618, %v610, %v615
    %v620 = vrsqrt.pop %v594
    %v621 = vmul.f32 %v620, %v594
    %v622 = vmul.f32 %v621, %v620
    %v623 = vmul.f32 0.5, %v622
    %v624 = vsub.f32 1.5, %v623
    %v625 = vmul.f32 %v620, %v624
    %vm626 = vweird.f32 %v594
    %vm627 = vweird.f32 %v620
    %vm628 = vmor %vm626, %vm627
    %v629 = vsel %vm628, %v620, %v625
    %v630 = vrsqrt.pop %v595
    %v631 = vmul.f32 %v630, %v595
    %v632 = vmul.f32 %v631, %v630
    %v633 = vmul.f32 0.5, %v632
    %v634 = vsub.f32 1.5, %v633
    %v635 = vmul.f32 %v630, %v634
    %vm636 = vweird.f32 %v595
    %vm637 = vweird.f32 %v630
    %vm638 = vmor %vm636, %vm637
    %v639 = vsel %vm638, %v630, %v635
    %v640 = vrsqrt.pop %v596
    %v641 = vmul.f32 %v640, %v596
    %v642 = vmul.f32 %v641, %v640
    %v643 = vmul.f32 0.5, %v642
    %v644 = vsub.f32 1.5, %v643
    %v645 = vmul.f32 %v640, %v644
    %vm646 = vweird.f32 %v596
    %vm647 = vweird.f32 %v640
    %vm648 = vmor %vm646, %vm647
    %v649 = vsel %vm648, %v640, %v645
    %v650 = vrsqrt.pop %v597
    %v651 = vmul.f32 %v650, %v597
    %v652 = vmul.f32 %v651, %v650
    %v653 = vmul.f32 0.5, %v652
    %v654 = vsub.f32 1.5, %v653
    %v655 = vmul.f32 %v650, %v654
    %vm656 = vweird.f32 %v597
    %vm657 = vweird.f32 %v650
    %vm658 = vmor %vm656, %vm657
    %v659 = vsel %vm658, %v650, %v655
    %v660 = vrsqrt.pop %v598
    %v661 = vmul.f32 %v660, %v598
    %v662 = vmul.f32 %v661, %v660
    %v663 = vmul.f32 0.5, %v662
    %v664 = vsub.f32 1.5, %v663
    %v665 = vmul.f32 %v660, %v664
    %vm666 = vweird.f32 %v598
    %vm667 = vweird.f32 %v660
    %vm668 = vmor %vm666, %vm667
    %v669 = vsel %vm668, %v660, %v665
    %v670 = vrsqrt.pop %v599
    %v671 = vmul.f32 %v670, %v599
    %v672 = vmul.f32 %v671, %v670
    %v673 = vmul.f32 0.5, %v672
    %v674 = vsub.f32 1.5, %v673
    %v675 = vmul.f32 %v670, %v674
    %vm676 = vweird.f32 %v599
    %vm677 = vweird.f32 %v670
    %vm678 = vmor %vm676, %vm677
    %v679 = vsel %vm678, %v670, %v675
    %v680 = vmul.f32 %v584, %v609
    %v681 = vmul.f32 %v585, %v619
    %v682 = vmul.f32 %v586, %v629
    %v683 = vmul.f32 %v587, %v639
    %v684 = vmul.f32 %v588, %v649
    %v685 = vmul.f32 %v589, %v659
    %v686 = vmul.f32 %v590, %v669
    %v687 = vmul.f32 %v591, %v679
    %v688 = vadd.f32 %v444, 1e-12
    %v689 = vrsqrt.pop %v688
    %v690 = vmul.f32 %v689, %v688
    %v691 = vmul.f32 %v690, %v689
    %v692 = vmul.f32 0.5, %v691
    %v693 = vsub.f32 1.5, %v692
    %v694 = vmul.f32 %v689, %v693
    %vm695 = vweird.f32 %v688
    %vm696 = vweird.f32 %v689
    %vm697 = vmor %vm695, %vm696
    %v698 = vsel %vm697, %v689, %v694
    %v699 = vmul.f32 %v680, %v698
    %v700 = vmul.f32 %v681, %v698
    %v701 = vmul.f32 %v682, %v698
    %v702 = vmul.f32 %v683, %v698
    %v703 = vmul.f32 %v684, %v698
    %v704 = vmul.f32 %v685, %v698
    %v705 = vmul.f32 %v686, %v698
    %v706 = vmul.f32 %v687, %v698
    %v707 = vsub.f32 1.0, %v699
    %v708 = vsub.f32 1.0, %v700
    %v709 = vsub.f32 1.0, %v701
    %v710 = vsub.f32 1.0, %v702
    %v711 = vsub.f32 1.0, %v703
    %v712 = vsub.f32 1.0, %v704
    %v713 = vsub.f32 1.0, %v705
    %v714 = vsub.f32 1.0, %v706
    %v715 = vadd.f32 %v414, %v444
    %v716 = vadd.f32 %v417, %v444
    %v717 = vadd.f32 %v420, %v444
    %v718 = vadd.f32 %v423, %v444
    %v719 = vadd.f32 %v426, %v444
    %v720 = vadd.f32 %v429, %v444
    %v721 = vadd.f32 %v432, %v444
    %v722 = vadd.f32 %v435, %v444
    %v723 = vmul.f32 %v584, 2.0
    %v724 = vmul.f32 %v585, 2.0
    %v725 = vmul.f32 %v586, 2.0
    %v726 = vmul.f32 %v587, 2.0
    %v727 = vmul.f32 %v588, 2.0
    %v728 = vmul.f32 %v589, 2.0
    %v729 = vmul.f32 %v590, 2.0
    %v730 = vmul.f32 %v591, 2.0
    %v731 = vsub.f32 %v715, %v723
    %v732 = vsub.f32 %v716, %v724
    %v733 = vsub.f32 %v717, %v725
    %v734 = vsub.f32 %v718, %v726
    %v735 = vsub.f32 %v719, %v727
    %v736 = vsub.f32 %v720, %v728
    %v737 = vsub.f32 %v721, %v729
    %v738 = vsub.f32 %v722, %v730
    %v739 = vmax.f32 %v731, 1e-05
    %v740 = vmax.f32 %v732, 1e-05
    %v741 = vmax.f32 %v733, 1e-05
    %v742 = vmax.f32 %v734, 1e-05
    %v743 = vmax.f32 %v735, 1e-05
    %v744 = vmax.f32 %v736, 1e-05
    %v745 = vmax.f32 %v737, 1e-05
    %v746 = vmax.f32 %v738, 1e-05
    %v747 = vmin.f32 %v739, 100000.0
    %v748 = vmin.f32 %v740, 100000.0
    %v749 = vmin.f32 %v741, 100000.0
    %v750 = vmin.f32 %v742, 100000.0
    %v751 = vmin.f32 %v743, 100000.0
    %v752 = vmin.f32 %v744, 100000.0
    %v753 = vmin.f32 %v745, 100000.0
    %v754 = vmin.f32 %v746, 100000.0
    %v755 = vmul.f32 %v747, 0.33333334
    %v756 = vmul.f32 %v748, 0.33333334
    %v757 = vmul.f32 %v749, 0.33333334
    %v758 = vmul.f32 %v750, 0.33333334
    %v759 = vmul.f32 %v751, 0.33333334
    %v760 = vmul.f32 %v752, 0.33333334
    %v761 = vmul.f32 %v753, 0.33333334
    %v762 = vmul.f32 %v754, 0.33333334
    %v763 = vrsqrt.pop %v755
    %v764 = vmul.f32 %v763, %v755
    %v765 = vmul.f32 %v764, %v763
    %v766 = vmul.f32 0.5, %v765
    %v767 = vsub.f32 1.5, %v766
    %v768 = vmul.f32 %v763, %v767
    %v769 = vmul.f32 %v755, %v768
    %vm770 = vcmp.eq.f32.partialorder %v755, inf
    %v771 = vsel %vm770, %v755, %v769
    %vm772 = vcmp.eq.f32.partialorder %v755, 0.0
    %v773 = vand.u32 %v755, 2147483648
    %v774 = vsel %vm772, %v773, %v771
    %v775 = vrsqrt.pop %v756
    %v776 = vmul.f32 %v775, %v756
    %v777 = vmul.f32 %v776, %v775
    %v778 = vmul.f32 0.5, %v777
    %v779 = vsub.f32 1.5, %v778
    %v780 = vmul.f32 %v775, %v779
    %v781 = vmul.f32 %v756, %v780
    %vm782 = vcmp.eq.f32.partialorder %v756, inf
    %v783 = vsel %vm782, %v756, %v781
    %vm784 = vcmp.eq.f32.partialorder %v756, 0.0
    %v785 = vand.u32 %v756, 2147483648
    %v786 = vsel %vm784, %v785, %v783
    %v787 = vrsqrt.pop %v757
    %v788 = vmul.f32 %v787, %v757
    %v789 = vmul.f32 %v788, %v787
    %v790 = vmul.f32 0.5, %v789
    %v791 = vsub.f32 1.5, %v790
    %v792 = vmul.f32 %v787, %v791
    %v793 = vmul.f32 %v757, %v792
    %vm794 = vcmp.eq.f32.partialorder %v757, inf
    %v795 = vsel %vm794, %v757, %v793
    %vm796 = vcmp.eq.f32.partialorder %v757, 0.0
    %v797 = vand.u32 %v757, 2147483648
    %v798 = vsel %vm796, %v797, %v795
    %v799 = vrsqrt.pop %v758
    %v800 = vmul.f32 %v799, %v758
    %v801 = vmul.f32 %v800, %v799
    %v802 = vmul.f32 0.5, %v801
    %v803 = vsub.f32 1.5, %v802
    %v804 = vmul.f32 %v799, %v803
    %v805 = vmul.f32 %v758, %v804
    %vm806 = vcmp.eq.f32.partialorder %v758, inf
    %v807 = vsel %vm806, %v758, %v805
    %vm808 = vcmp.eq.f32.partialorder %v758, 0.0
    %v809 = vand.u32 %v758, 2147483648
    %v810 = vsel %vm808, %v809, %v807
    %v811 = vrsqrt.pop %v759
    %v812 = vmul.f32 %v811, %v759
    %v813 = vmul.f32 %v812, %v811
    %v814 = vmul.f32 0.5, %v813
    %v815 = vsub.f32 1.5, %v814
    %v816 = vmul.f32 %v811, %v815
    %v817 = vmul.f32 %v759, %v816
    %vm818 = vcmp.eq.f32.partialorder %v759, inf
    %v819 = vsel %vm818, %v759, %v817
    %vm820 = vcmp.eq.f32.partialorder %v759, 0.0
    %v821 = vand.u32 %v759, 2147483648
    %v822 = vsel %vm820, %v821, %v819
    %v823 = vrsqrt.pop %v760
    %v824 = vmul.f32 %v823, %v760
    %v825 = vmul.f32 %v824, %v823
    %v826 = vmul.f32 0.5, %v825
    %v827 = vsub.f32 1.5, %v826
    %v828 = vmul.f32 %v823, %v827
    %v829 = vmul.f32 %v760, %v828
    %vm830 = vcmp.eq.f32.partialorder %v760, inf
    %v831 = vsel %vm830, %v760, %v829
    %vm832 = vcmp.eq.f32.partialorder %v760, 0.0
    %v833 = vand.u32 %v760, 2147483648
    %v834 = vsel %vm832, %v833, %v831
    %v835 = vrsqrt.pop %v761
    %v836 = vmul.f32 %v835, %v761
    %v837 = vmul.f32 %v836, %v835
    %v838 = vmul.f32 0.5, %v837
    %v839 = vsub.f32 1.5, %v838
    %v840 = vmul.f32 %v835, %v839
    %v841 = vmul.f32 %v761, %v840
    %vm842 = vcmp.eq.f32.partialorder %v761, inf
    %v843 = vsel %vm842, %v761, %v841
    %vm844 = vcmp.eq.f32.partialorder %v761, 0.0
    %v845 = vand.u32 %v761, 2147483648
    %v846 = vsel %vm844, %v845, %v843
    %v847 = vrsqrt.pop %v762
    %v848 = vmul.f32 %v847, %v762
    %v849 = vmul.f32 %v848, %v847
    %v850 = vmul.f32 0.5, %v849
    %v851 = vsub.f32 1.5, %v850
    %v852 = vmul.f32 %v847, %v851
    %v853 = vmul.f32 %v762, %v852
    %vm854 = vcmp.eq.f32.partialorder %v762, inf
    %v855 = vsel %vm854, %v762, %v853
    %vm856 = vcmp.eq.f32.partialorder %v762, 0.0
    %v857 = vand.u32 %v762, 2147483648
    %v858 = vsel %vm856, %v857, %v855
    %v859 = vadd.f32 %v707, %v774
    %v860 = vadd.f32 %v708, %v786
    %v861 = vadd.f32 %v709, %v798
    %v862 = vadd.f32 %v710, %v810
    %v863 = vadd.f32 %v711, %v822
    %v864 = vadd.f32 %v712, %v834
    %v865 = vadd.f32 %v713, %v846
    %v866 = vadd.f32 %v714, %v858
    %v867 = vld [vmem:[#allocation3] sm:$0xff]
    %v868 = vld [vmem:[#allocation3 + $0x8] sm:$0xff]
    %v869 = vld [vmem:[#allocation3 + $0x10] sm:$0xff]
    %v870 = vld [vmem:[#allocation3 + $0x18] sm:$0xff]
    %v871 = vld [vmem:[#allocation3 + $0x20] sm:$0xff]
    %v872 = vld [vmem:[#allocation3 + $0x28] sm:$0xff]
    %v873 = vld [vmem:[#allocation3 + $0x30] sm:$0xff]
    %v874 = vld [vmem:[#allocation3 + $0x38] sm:$0xff]
    %v875 = vsel %vm97, %v859, inf
    %876 = vmin.xlane.f32.xlu0 %v875
    %v877 = vpop.xlane.xlu0 %876
    %v878 = vsel %vm97, %v860, inf
    %879 = vmin.xlane.f32.xlu0 %v878
    %v880 = vpop.xlane.xlu0 %879
    %v881 = vsel %vm97, %v861, inf
    %882 = vmin.xlane.f32.xlu0 %v881
    %v883 = vpop.xlane.xlu0 %882
    %v884 = vsel %vm97, %v862, inf
    %885 = vmin.xlane.f32.xlu0 %v884
    %v886 = vpop.xlane.xlu0 %885
    %v887 = vsel %vm97, %v863, inf
    %888 = vmin.xlane.f32.xlu0 %v887
    %v889 = vpop.xlane.xlu0 %888
    %v890 = vsel %vm97, %v864, inf
    %891 = vmin.xlane.f32.xlu0 %v890
    %v892 = vpop.xlane.xlu0 %891
    %v893 = vsel %vm97, %v865, inf
    %894 = vmin.xlane.f32.xlu0 %v893
    %v895 = vpop.xlane.xlu0 %894
    %v896 = vsel %vm97, %v866, inf
    %897 = vmin.xlane.f32.xlu0 %v896
    %v898 = vpop.xlane.xlu0 %897
    %v899 = vmin.f32 %v867, %v877
    %v900 = vmin.f32 %v868, %v880
    %v901 = vmin.f32 %v869, %v883
    %v902 = vmin.f32 %v870, %v886
    %v903 = vmin.f32 %v871, %v889
    %v904 = vmin.f32 %v872, %v892
    %v905 = vmin.f32 %v873, %v895
    %v906 = vmin.f32 %v874, %v898
    %907 = vst.msk [vmem:[#allocation3] sm:$0xff] %vm333, %v899
    %908 = vst.msk [vmem:[#allocation3 + $0x8] sm:$0xff] %vm333, %v900
    %909 = vst.msk [vmem:[#allocation3 + $0x10] sm:$0xff] %vm333, %v901
    %910 = vst.msk [vmem:[#allocation3 + $0x18] sm:$0xff] %vm333, %v902
    %911 = vst.msk [vmem:[#allocation3 + $0x20] sm:$0xff] %vm333, %v903
    %912 = vst.msk [vmem:[#allocation3 + $0x28] sm:$0xff] %vm333, %v904
    %913 = vst.msk [vmem:[#allocation3 + $0x30] sm:$0xff] %vm333, %v905
    %914 = vst.msk [vmem:[#allocation3 + $0x38] sm:$0xff] %vm333, %v906
    %v915 = vmin.f32 %v875, %v887
    %v916 = vmin.f32 %v878, %v890
    %v917 = vmin.f32 %v881, %v893
    %v918 = vmin.f32 %v884, %v896
    %v919 = vmin.f32 %v915, %v916
    %v920 = vmin.f32 %v917, %v918
    %v921 = vmin.f32 %v919, %v920
    %v922 = vrot.slane %v921, 4
    %v923 = vmin.f32 %v921, %v922
    %v924 = vrot.slane %v923, 2
    %v925 = vmin.f32 %v923, %v924
    %v926 = vrot.slane %v925, 1
    %v927 = vmin.f32 %v925, %v926
    %v928 = vld [vmem:[#allocation5] sm:$0x1]
    %v929 = vsel %vm97, %v927, 0.0
    %930 = vadd.xlane.f32.xlu0 %v929
    %v931 = vpop.xlane.xlu0 %930
    %v932 = vadd.f32 %v928, %v931
    %933 = vst.msk [vmem:[#allocation5] sm:$0x1] %vm360, %v932
    // Predicated region
    $region26: #{style_loss_forward.1} parent=1 // pred_check
      %p934 = pneg %p27
    $region27: #{style_loss_forward.1} parent=1 // pred_check_branch
      %936 = sbr.rel (%p934) target = $region29
    $region28: #{style_loss_forward.1} parent=1 // pred_region
      %v937 = vld [vmem:[#allocation2] sm:$0xff]
      %v938 = vld [vmem:[#allocation2 + $0x8] sm:$0xff]
      %v939 = vld [vmem:[#allocation2 + $0x10] sm:$0xff]
      %v940 = vld [vmem:[#allocation2 + $0x18] sm:$0xff]
      %v941 = vld [vmem:[#allocation2 + $0x20] sm:$0xff]
      %v942 = vld [vmem:[#allocation2 + $0x28] sm:$0xff]
      %v943 = vld [vmem:[#allocation2 + $0x30] sm:$0xff]
      %v944 = vld [vmem:[#allocation2 + $0x38] sm:$0xff]
      %v945 = vsel %vm333, %v937, 0.0
      %v946 = vsel %vm333, %v938, 0.0
      %v947 = vadd.f32 %v945, %v946
      %v948 = vsel %vm333, %v939, 0.0
      %v949 = vadd.f32 %v947, %v948
      %v950 = vsel %vm333, %v940, 0.0
      %v951 = vadd.f32 %v949, %v950
      %v952 = vsel %vm333, %v941, 0.0
      %v953 = vadd.f32 %v951, %v952
      %v954 = vsel %vm333, %v942, 0.0
      %v955 = vadd.f32 %v953, %v954
      %v956 = vsel %vm333, %v943, 0.0
      %v957 = vadd.f32 %v955, %v956
      %v958 = vsel %vm333, %v944, 0.0
      %v959 = vadd.f32 %v957, %v958
      %v960 = vrot.slane %v959, 4
      %v961 = vadd.f32 %v959, %v960
      %v962 = vrot.slane %v961, 2
      %v963 = vadd.f32 %v961, %v962
      %v964 = vrot.slane %v963, 1
      %v965 = vadd.f32 %v963, %v964
      %v966 = vmul.f32 %v965, 0.015625
      %v967 = vld [vmem:[#allocation4] sm:$0x1]
      %v968 = vmul.f32 %v967, 0.015625
      %v969 = vmax.f32 %v966, %v968
      %970 = vst.msk [vmem:[#allocation12] sm:$0x1] %vm360, %v969
      %v971 = vld [vmem:[#allocation3] sm:$0xff]
      %v972 = vld [vmem:[#allocation3 + $0x8] sm:$0xff]
      %v973 = vld [vmem:[#allocation3 + $0x10] sm:$0xff]
      %v974 = vld [vmem:[#allocation3 + $0x18] sm:$0xff]
      %v975 = vld [vmem:[#allocation3 + $0x20] sm:$0xff]
      %v976 = vld [vmem:[#allocation3 + $0x28] sm:$0xff]
      %v977 = vld [vmem:[#allocation3 + $0x30] sm:$0xff]
      %v978 = vld [vmem:[#allocation3 + $0x38] sm:$0xff]
      %v979 = vsel %vm333, %v971, 0.0
      %v980 = vsel %vm333, %v972, 0.0
      %v981 = vadd.f32 %v979, %v980
      %v982 = vsel %vm333, %v973, 0.0
      %v983 = vadd.f32 %v981, %v982
      %v984 = vsel %vm333, %v974, 0.0
      %v985 = vadd.f32 %v983, %v984
      %v986 = vsel %vm333, %v975, 0.0
      %v987 = vadd.f32 %v985, %v986
      %v988 = vsel %vm333, %v976, 0.0
      %v989 = vadd.f32 %v987, %v988
      %v990 = vsel %vm333, %v977, 0.0
      %v991 = vadd.f32 %v989, %v990
      %v992 = vsel %vm333, %v978, 0.0
      %v993 = vadd.f32 %v991, %v992
      %v994 = vrot.slane %v993, 4
      %v995 = vadd.f32 %v993, %v994
      %v996 = vrot.slane %v995, 2
      %v997 = vadd.f32 %v995, %v996
      %v998 = vrot.slane %v997, 1
      %v999 = vadd.f32 %v997, %v998
      %v1000 = vmul.f32 %v999, 0.015625
      %v1001 = vld [vmem:[#allocation5] sm:$0x1]
      %v1002 = vmul.f32 %v1001, 0.015625
      %v1003 = vmax.f32 %v1000, %v1002
      %1004 = vst.msk [vmem:[#allocation13] sm:$0x1] %vm360, %v1003
      %v1005 = vsel %vm71, %v54, 0.0
      %v1006 = vsel %vm71, %v55, 0.0
      %v1007 = vadd.f32 %v1005, %v1006
      %v1008 = vsel %vm71, %v56, 0.0
      %v1009 = vadd.f32 %v1007, %v1008
      %v1010 = vsel %vm71, %v57, 0.0
      %v1011 = vadd.f32 %v1009, %v1010
      %v1012 = vsel %vm71, %v58, 0.0
      %v1013 = vadd.f32 %v1011, %v1012
      %v1014 = vsel %vm71, %v59, 0.0
      %v1015 = vadd.f32 %v1013, %v1014
      %v1016 = vsel %vm71, %v60, 0.0
      %v1017 = vadd.f32 %v1015, %v1016
      %v1018 = vsel %vm71, %v61, 0.0
      %v1019 = vadd.f32 %v1017, %v1018
      %v1020 = vrot.slane %v1019, 4
      %v1021 = vadd.f32 %v1019, %v1020
      %v1022 = vrot.slane %v1021, 2
      %v1023 = vadd.f32 %v1021, %v1022
      %v1024 = vrot.slane %v1023, 1
      %v1025 = vadd.f32 %v1023, %v1024
      %v1026 = vmul.f32 %v1025, 0.015625
      %v1027 = vsub.f32 %v54, %v1026
      %v1028 = vsub.f32 %v55, %v1026
      %v1029 = vsub.f32 %v56, %v1026
      %v1030 = vsub.f32 %v57, %v1026
      %v1031 = vsub.f32 %v58, %v1026
      %v1032 = vsub.f32 %v59, %v1026
      %v1033 = vsub.f32 %v60, %v1026
      %v1034 = vsub.f32 %v61, %v1026
      %1035 = vxpose.xlu0.b32.start [1/16] %v1027, 128
      %1036 = vxpose.xlu0.b32.cont [2/16] %v1028, 128
      %1037 = vxpose.xlu0.b32.cont [3/16] %v1029, 128
      %1038 = vxpose.xlu0.b32.cont [4/16] %v1030, 128
      %1039 = vxpose.xlu0.b32.cont [5/16] %v1031, 128
      %1040 = vxpose.xlu0.b32.cont [6/16] %v1032, 128
      %1041 = vxpose.xlu0.b32.cont [7/16] %v1033, 128
      %1042 = vxpose.xlu0.b32.cont [8/16] %v1034, 128
      %1043 = vxpose.xlu0.b32.cont [9/16] 0.0, 128
      %1044 = vxpose.xlu0.b32.cont [10/16] 0.0, 128
      %1045 = vxpose.xlu0.b32.cont [11/16] 0.0, 128
      %1046 = vxpose.xlu0.b32.cont [12/16] 0.0, 128
      %1047 = vxpose.xlu0.b32.cont [13/16] 0.0, 128
      %1048 = vxpose.xlu0.b32.cont [14/16] 0.0, 128
      %1049 = vxpose.xlu0.b32.cont [15/16] 0.0, 128
      %1050 = vxpose.xlu0.b32.end [16/16] 0.0, 128
      %v1051 = vpop.trf.xlu0
      %v1052 = vpop.trf.xlu0
      %v1053 = vpop.trf.xlu0
      %v1054 = vpop.trf.xlu0
      %v1055 = vpop.trf.xlu0
      %v1056 = vpop.trf.xlu0
      %v1057 = vpop.trf.xlu0
      %v1058 = vpop.trf.xlu0
      %v1059 = vpop.trf.xlu0
      %v1060 = vpop.trf.xlu0
      %v1061 = vpop.trf.xlu0
      %v1062 = vpop.trf.xlu0
      %v1063 = vpop.trf.xlu0
      %v1064 = vpop.trf.xlu0
      %v1065 = vpop.trf.xlu0
      %v1066 = vpop.trf.xlu0
      %v1068 = vsel %vm97, %v1051, 0
      %1070 = vmatpush.msra.mxu0 0.0
      %1071 = vmatpush.msra.mxu0 0.0
      %1072 = vmatpush.msra.mxu0 0.0
      %1073 = vmatpush.msra.mxu0 0.0
      %1074 = vmatpush.msra.mxu0 0.0
      %1075 = vmatpush.msra.mxu0 0.0
      %1076 = vmatpush.msra.mxu0 0.0
      %1077 = vmatpush.msra.mxu0 0.0
      %1078 = vmatpush.msra.mxu0 %v1034
      %1079 = vmatpush.msra.mxu0 %v1033
      %1080 = vmatpush.msra.mxu0 %v1032
      %1081 = vmatpush.msra.mxu0 %v1031
      %1082 = vmatpush.msra.mxu0 %v1030
      %1083 = vmatpush.msra.mxu0 %v1029
      %1084 = vmatpush.msra.mxu0 %v1028
      %1085 = vmatpush.msra.mxu0 %v1027
      %1086 = vmatmul.f32.gmra.mxu0 %v1068
      %v1087 = vpop.f32.mrf.mxu0
      %v1088 = vadd.f32 0.0, %v1087
      %1089 = vdwg.mxu0
      %v1090 = vmul.f32 %v1088, 0.015873017
      %v1091 = vld [vmem:[#allocation6] sm:$0xff]
      %v1092 = vmul.f32 %v1091, 0.015625
      %v1093 = vld [vmem:[#allocation7] sm:$0xff]
      %1094 = vxpose.xlu0.b32.start [1/16] %v1092, 128
      %1095 = vxpose.xlu0.b32.cont [2/16] 0.0, 128
      %1096 = vxpose.xlu0.b32.cont [3/16] 0.0, 128
      %1097 = vxpose.xlu0.b32.cont [4/16] 0.0, 128
      %1098 = vxpose.xlu0.b32.cont [5/16] 0.0, 128
      %1099 = vxpose.xlu0.b32.cont [6/16] 0.0, 128
      %1100 = vxpose.xlu0.b32.cont [7/16] 0.0, 128
      %1101 = vxpose.xlu0.b32.cont [8/16] 0.0, 128
      %1102 = vxpose.xlu0.b32.cont [9/16] 0.0, 128
      %1103 = vxpose.xlu0.b32.cont [10/16] 0.0, 128
      %1104 = vxpose.xlu0.b32.cont [11/16] 0.0, 128
      %1105 = vxpose.xlu0.b32.cont [12/16] 0.0, 128
      %1106 = vxpose.xlu0.b32.cont [13/16] 0.0, 128
      %1107 = vxpose.xlu0.b32.cont [14/16] 0.0, 128
      %1108 = vxpose.xlu0.b32.cont [15/16] 0.0, 128
      %1109 = vxpose.xlu0.b32.end [16/16] 0.0, 128
      %v1110 = vpop.trf.xlu0
      %v1111 = vpop.trf.xlu0
      %v1112 = vpop.trf.xlu0
      %v1113 = vpop.trf.xlu0
      %v1114 = vpop.trf.xlu0
      %v1115 = vpop.trf.xlu0
      %v1116 = vpop.trf.xlu0
      %v1117 = vpop.trf.xlu0
      %v1118 = vpop.trf.xlu0
      %v1119 = vpop.trf.xlu0
      %v1120 = vpop.trf.xlu0
      %v1121 = vpop.trf.xlu0
      %v1122 = vpop.trf.xlu0
      %v1123 = vpop.trf.xlu0
      %v1124 = vpop.trf.xlu0
      %v1125 = vpop.trf.xlu0
      %1127 = vset.pattern.permute.xlu0 0
      %1128 = vperm.xlu0 %1127, %v1092
      %v1129 = vpop.permute.xlu0 %1128
      %v1131 = vperm.slane %v1110, 0
      %v1132 = vmul.f32 %v1129, %v1131
      %v1133 = vmul.f32 %v1132, 64.0
      %v1134 = vsub.f32 %v1093, %v1133
      %v1135 = vmul.f32 %v1134, 0.015873017
      %v1136 = vsub.f32 %v1026, %v1110
      %v1137 = vand.u32 2147483647, %v1136
      %vm1138 = vcmask 57344
      %v1139 = vsel %vm1138, %v1137, 0.0
      %1140 = vadd.xlane.f32.xlu0 %v1139
      %v1141 = vpop.xlane.xlu0 %1140
      %v1142 = vadd.f32 %v1141, 0.0
      %v1143 = vmul.f32 %v1142, 0.125
      %v1144 = vsub.f32 %v1090, %v1135
      %v1145 = vand.u32 2147483647, %v1144
      %v1146 = vsel %vm71, %v1145, 0.0
      %1147 = vadd.xlane.f32.xlu0 %v1146
      %v1148 = vpop.xlane.xlu0 %1147
      %v1149 = vrot.slane %v1148, 4
      %v1150 = vadd.f32 %v1148, %v1149
      %v1151 = vrot.slane %v1150, 2
      %v1152 = vadd.f32 %v1150, %v1151
      %v1153 = vrot.slane %v1152, 1
      %v1154 = vadd.f32 %v1152, %v1153
      %v1155 = vmul.f32 %v1154, 0.015625
      %v1156 = vadd.f32 %v1143, %v1155
      %1157 = vst.msk [vmem:[#allocation10] sm:$0x1] %vm360, %v1156
      %v1158 = vld [vmem:[%s1] sm:$0xff]
      %v1159 = vld [vmem:[%s1 + $0x8] sm:$0xff]
      %v1160 = vld [vmem:[%s1 + $0x10] sm:$0xff]
      %v1161 = vld [vmem:[%s1 + $0x18] sm:$0xff]
      %v1162 = vld [vmem:[%s1 + $0x20] sm:$0xff]
      %v1163 = vld [vmem:[%s1 + $0x28] sm:$0xff]
      %v1164 = vld [vmem:[%s1 + $0x30] sm:$0xff]
      %v1165 = vld [vmem:[%s1 + $0x38] sm:$0xff]
      %v1166 = vmul.f32 %v1158, %v1158
      %v1167 = vmul.f32 %v1159, %v1159
      %v1168 = vmul.f32 %v1160, %v1160
      %v1169 = vmul.f32 %v1161, %v1161
      %v1170 = vmul.f32 %v1162, %v1162
      %v1171 = vmul.f32 %v1163, %v1163
      %v1172 = vmul.f32 %v1164, %v1164
      %v1173 = vmul.f32 %v1165, %v1165
      %v1174 = vsel %vm71, %v1166, 0.0
      %1175 = vadd.xlane.f32.xlu0 %v1174
      %v1176 = vpop.xlane.xlu0 %1175
      %v1177 = vsel %vm71, %v1167, 0.0
      %1178 = vadd.xlane.f32.xlu0 %v1177
      %v1179 = vpop.xlane.xlu0 %1178
      %v1180 = vsel %vm71, %v1168, 0.0
      %1181 = vadd.xlane.f32.xlu0 %v1180
      %v1182 = vpop.xlane.xlu0 %1181
      %v1183 = vsel %vm71, %v1169, 0.0
      %1184 = vadd.xlane.f32.xlu0 %v1183
      %v1185 = vpop.xlane.xlu0 %1184
      %v1186 = vsel %vm71, %v1170, 0.0
      %1187 = vadd.xlane.f32.xlu0 %v1186
      %v1188 = vpop.xlane.xlu0 %1187
      %v1189 = vsel %vm71, %v1171, 0.0
      %1190 = vadd.xlane.f32.xlu0 %v1189
      %v1191 = vpop.xlane.xlu0 %1190
      %v1192 = vsel %vm71, %v1172, 0.0
      %1193 = vadd.xlane.f32.xlu0 %v1192
      %v1194 = vpop.xlane.xlu0 %1193
      %v1195 = vsel %vm71, %v1173, 0.0
      %1196 = vadd.xlane.f32.xlu0 %v1195
      %v1197 = vpop.xlane.xlu0 %1196
      %v1198 = vadd.f32 %v1176, 1e-12
      %v1199 = vadd.f32 %v1179, 1e-12
      %v1200 = vadd.f32 %v1182, 1e-12
      %v1201 = vadd.f32 %v1185, 1e-12
      %v1202 = vadd.f32 %v1188, 1e-12
      %v1203 = vadd.f32 %v1191, 1e-12
      %v1204 = vadd.f32 %v1194, 1e-12
      %v1205 = vadd.f32 %v1197, 1e-12
      %v1206 = vrsqrt.pop %v1198
      %v1207 = vmul.f32 %v1206, %v1198
      %v1208 = vmul.f32 %v1207, %v1206
      %v1209 = vmul.f32 0.5, %v1208
      %v1210 = vsub.f32 1.5, %v1209
      %v1211 = vmul.f32 %v1206, %v1210
      %vm1212 = vweird.f32 %v1198
      %vm1213 = vweird.f32 %v1206
      %vm1214 = vmor %vm1212, %vm1213
      %v1215 = vsel %vm1214, %v1206, %v1211
      %v1216 = vrsqrt.pop %v1199
      %v1217 = vmul.f32 %v1216, %v1199
      %v1218 = vmul.f32 %v1217, %v1216
      %v1219 = vmul.f32 0.5, %v1218
      %v1220 = vsub.f32 1.5, %v1219
      %v1221 = vmul.f32 %v1216, %v1220
      %vm1222 = vweird.f32 %v1199
      %vm1223 = vweird.f32 %v1216
      %vm1224 = vmor %vm1222, %vm1223
      %v1225 = vsel %vm1224, %v1216, %v1221
      %v1226 = vrsqrt.pop %v1200
      %v1227 = vmul.f32 %v1226, %v1200
      %v1228 = vmul.f32 %v1227, %v1226
      %v1229 = vmul.f32 0.5, %v1228
      %v1230 = vsub.f32 1.5, %v1229
      %v1231 = vmul.f32 %v1226, %v1230
      %vm1232 = vweird.f32 %v1200
      %vm1233 = vweird.f32 %v1226
      %vm1234 = vmor %vm1232, %vm1233
      %v1235 = vsel %vm1234, %v1226, %v1231
      %v1236 = vrsqrt.pop %v1201
      %v1237 = vmul.f32 %v1236, %v1201
      %v1238 = vmul.f32 %v1237, %v1236
      %v1239 = vmul.f32 0.5, %v1238
      %v1240 = vsub.f32 1.5, %v1239
      %v1241 = vmul.f32 %v1236, %v1240
      %vm1242 = vweird.f32 %v1201
      %vm1243 = vweird.f32 %v1236
      %vm1244 = vmor %vm1242, %vm1243
      %v1245 = vsel %vm1244, %v1236, %v1241
      %v1246 = vrsqrt.pop %v1202
      %v1247 = vmul.f32 %v1246, %v1202
      %v1248 = vmul.f32 %v1247, %v1246
      %v1249 = vmul.f32 0.5, %v1248
      %v1250 = vsub.f32 1.5, %v1249
      %v1251 = vmul.f32 %v1246, %v1250
      %vm1252 = vweird.f32 %v1202
      %vm1253 = vweird.f32 %v1246
      %vm1254 = vmor %vm1252, %vm1253
      %v1255 = vsel %vm1254, %v1246, %v1251
      %v1256 = vrsqrt.pop %v1203
      %v1257 = vmul.f32 %v1256, %v1203
      %v1258 = vmul.f32 %v1257, %v1256
      %v1259 = vmul.f32 0.5, %v1258
      %v1260 = vsub.f32 1.5, %v1259
      %v1261 = vmul.f32 %v1256, %v1260
      %vm1262 = vweird.f32 %v1203
      %vm1263 = vweird.f32 %v1256
      %vm1264 = vmor %vm1262, %vm1263
      %v1265 = vsel %vm1264, %v1256, %v1261
      %v1266 = vrsqrt.pop %v1204
      %v1267 = vmul.f32 %v1266, %v1204
      %v1268 = vmul.f32 %v1267, %v1266
      %v1269 = vmul.f32 0.5, %v1268
      %v1270 = vsub.f32 1.5, %v1269
      %v1271 = vmul.f32 %v1266, %v1270
      %vm1272 = vweird.f32 %v1204
      %vm1273 = vweird.f32 %v1266
      %vm1274 = vmor %vm1272, %vm1273
      %v1275 = vsel %vm1274, %v1266, %v1271
      %v1276 = vrsqrt.pop %v1205
      %v1277 = vmul.f32 %v1276, %v1205
      %v1278 = vmul.f32 %v1277, %v1276
      %v1279 = vmul.f32 0.5, %v1278
      %v1280 = vsub.f32 1.5, %v1279
      %v1281 = vmul.f32 %v1276, %v1280
      %vm1282 = vweird.f32 %v1205
      %vm1283 = vweird.f32 %v1276
      %vm1284 = vmor %vm1282, %vm1283
      %v1285 = vsel %vm1284, %v1276, %v1281
      %1286 = vmatpush.xpose.msra.mxu0 0.0
      %1287 = vmatpush.xpose.msra.mxu0 0.0
      %1288 = vmatpush.xpose.msra.mxu0 0.0
      %1289 = vmatpush.xpose.msra.mxu0 0.0
      %1290 = vmatpush.xpose.msra.mxu0 0.0
      %1291 = vmatpush.xpose.msra.mxu0 0.0
      %1292 = vmatpush.xpose.msra.mxu0 0.0
      %1293 = vmatpush.xpose.msra.mxu0 0.0
      %1294 = vmatpush.xpose.msra.mxu0 %v127
      %1295 = vmatpush.xpose.msra.mxu0 %v124
      %1296 = vmatpush.xpose.msra.mxu0 %v121
      %1297 = vmatpush.xpose.msra.mxu0 %v118
      %1298 = vmatpush.xpose.msra.mxu0 %v115
      %1299 = vmatpush.xpose.msra.mxu0 %v112
      %1300 = vmatpush.xpose.msra.mxu0 %v109
      %1301 = vmatpush.xpose.msra.mxu0 %v106
      %1302 = vmatmul.f32.gmra.mxu0 %v106
      %v1303 = vpop.f32.mrf.mxu0
      %v1304 = vadd.f32 0.0, %v1303
      %1305 = vmatmul.f32.gmra.mxu0 %v109
      %v1306 = vpop.f32.mrf.mxu0
      %v1307 = vadd.f32 0.0, %v1306
      %1308 = vmatmul.f32.gmra.mxu0 %v112
      %v1309 = vpop.f32.mrf.mxu0
      %v1310 = vadd.f32 0.0, %v1309
      %1311 = vmatmul.f32.gmra.mxu0 %v115
      %v1312 = vpop.f32.mrf.mxu0
      %v1313 = vadd.f32 0.0, %v1312
      %1314 = vmatmul.f32.gmra.mxu0 %v118
      %v1315 = vpop.f32.mrf.mxu0
      %v1316 = vadd.f32 0.0, %v1315
      %1317 = vmatmul.f32.gmra.mxu0 %v121
      %v1318 = vpop.f32.mrf.mxu0
      %v1319 = vadd.f32 0.0, %v1318
      %1320 = vmatmul.f32.gmra.mxu0 %v124
      %v1321 = vpop.f32.mrf.mxu0
      %v1322 = vadd.f32 0.0, %v1321
      %1323 = vmatmul.f32.gmra.mxu0 %v127
      %v1324 = vpop.f32.mrf.mxu0
      %v1325 = vadd.f32 0.0, %v1324
      %1326 = vdwg.mxu0
      %v1328 = vsel %vm71, %v1158, 0
      %v1331 = vsel %vm71, %v1159, 0
      %v1334 = vsel %vm71, %v1160, 0
      %v1337 = vsel %vm71, %v1161, 0
      %v1340 = vsel %vm71, %v1162, 0
      %v1343 = vsel %vm71, %v1163, 0
      %v1346 = vsel %vm71, %v1164, 0
      %v1349 = vsel %vm71, %v1165, 0
      %1351 = vmatpush.xpose.msra.mxu0 0.0
      %1352 = vmatpush.xpose.msra.mxu0 0.0
      %1353 = vmatpush.xpose.msra.mxu0 0.0
      %1354 = vmatpush.xpose.msra.mxu0 0.0
      %1355 = vmatpush.xpose.msra.mxu0 0.0
      %1356 = vmatpush.xpose.msra.mxu0 0.0
      %1357 = vmatpush.xpose.msra.mxu0 0.0
      %1358 = vmatpush.xpose.msra.mxu0 0.0
      %1359 = vmatpush.xpose.msra.mxu0 %v1349
      %1360 = vmatpush.xpose.msra.mxu0 %v1346
      %1361 = vmatpush.xpose.msra.mxu0 %v1343
      %1362 = vmatpush.xpose.msra.mxu0 %v1340
      %1363 = vmatpush.xpose.msra.mxu0 %v1337
      %1364 = vmatpush.xpose.msra.mxu0 %v1334
      %1365 = vmatpush.xpose.msra.mxu0 %v1331
      %1366 = vmatpush.xpose.msra.mxu0 %v1328
      %1367 = vmatmul.f32.gmra.mxu0 %v1328
      %v1368 = vpop.f32.mrf.mxu0
      %v1369 = vadd.f32 0.0, %v1368
      %1370 = vmatmul.f32.gmra.mxu0 %v1331
      %v1371 = vpop.f32.mrf.mxu0
      %v1372 = vadd.f32 0.0, %v1371
      %1373 = vmatmul.f32.gmra.mxu0 %v1334
      %v1374 = vpop.f32.mrf.mxu0
      %v1375 = vadd.f32 0.0, %v1374
      %1376 = vmatmul.f32.gmra.mxu0 %v1337
      %v1377 = vpop.f32.mrf.mxu0
      %v1378 = vadd.f32 0.0, %v1377
      %1379 = vmatmul.f32.gmra.mxu0 %v1340
      %v1380 = vpop.f32.mrf.mxu0
      %v1381 = vadd.f32 0.0, %v1380
      %1382 = vmatmul.f32.gmra.mxu0 %v1343
      %v1383 = vpop.f32.mrf.mxu0
      %v1384 = vadd.f32 0.0, %v1383
      %1385 = vmatmul.f32.gmra.mxu0 %v1346
      %v1386 = vpop.f32.mrf.mxu0
      %v1387 = vadd.f32 0.0, %v1386
      %1388 = vmatmul.f32.gmra.mxu0 %v1349
      %v1389 = vpop.f32.mrf.mxu0
      %v1390 = vadd.f32 0.0, %v1389
      %1391 = vdwg.mxu0
      %v1392 = vmul.f32 %v1304, %v187
      %v1393 = vmul.f32 %v1307, %v197
      %v1394 = vmul.f32 %v1310, %v207
      %v1395 = vmul.f32 %v1313, %v217
      %v1396 = vmul.f32 %v1316, %v227
      %v1397 = vmul.f32 %v1319, %v237
      %v1398 = vmul.f32 %v1322, %v247
      %v1399 = vmul.f32 %v1325, %v257
      %1400 = vxpose.xlu0.b32.start [1/16] %v187, 128
      %1401 = vxpose.xlu0.b32.cont [2/16] %v197, 128
      %1402 = vxpose.xlu0.b32.cont [3/16] %v207, 128
      %1403 = vxpose.xlu0.b32.cont [4/16] %v217, 128
      %1404 = vxpose.xlu0.b32.cont [5/16] %v227, 128
      %1405 = vxpose.xlu0.b32.cont [6/16] %v237, 128
      %1406 = vxpose.xlu0.b32.cont [7/16] %v247, 128
      %1407 = vxpose.xlu0.b32.cont [8/16] %v257, 128
      %1408 = vxpose.xlu0.b32.cont [9/16] 0.0, 128
      %1409 = vxpose.xlu0.b32.cont [10/16] 0.0, 128
      %1410 = vxpose.xlu0.b32.cont [11/16] 0.0, 128
      %1411 = vxpose.xlu0.b32.cont [12/16] 0.0, 128
      %1412 = vxpose.xlu0.b32.cont [13/16] 0.0, 128
      %1413 = vxpose.xlu0.b32.cont [14/16] 0.0, 128
      %1414 = vxpose.xlu0.b32.cont [15/16] 0.0, 128
      %1415 = vxpose.xlu0.b32.end [16/16] 0.0, 128
      %v1416 = vpop.trf.xlu0
      %v1417 = vpop.trf.xlu0
      %v1418 = vpop.trf.xlu0
      %v1419 = vpop.trf.xlu0
      %v1420 = vpop.trf.xlu0
      %v1421 = vpop.trf.xlu0
      %v1422 = vpop.trf.xlu0
      %v1423 = vpop.trf.xlu0
      %v1424 = vpop.trf.xlu0
      %v1425 = vpop.trf.xlu0
      %v1426 = vpop.trf.xlu0
      %v1427 = vpop.trf.xlu0
      %v1428 = vpop.trf.xlu0
      %v1429 = vpop.trf.xlu0
      %v1430 = vpop.trf.xlu0
      %v1431 = vpop.trf.xlu0
      %v1432 = vperm.slane %v1416, 0
      %v1433 = vmul.f32 %v1392, %v1432
      %v1434 = vmul.f32 %v1393, %v1432
      %v1435 = vmul.f32 %v1394, %v1432
      %v1436 = vmul.f32 %v1395, %v1432
      %v1437 = vmul.f32 %v1396, %v1432
      %v1438 = vmul.f32 %v1397, %v1432
      %v1439 = vmul.f32 %v1398, %v1432
      %v1440 = vmul.f32 %v1399, %v1432
      %v1441 = vmul.f32 %v1369, %v1215
      %v1442 = vmul.f32 %v1372, %v1225
      %v1443 = vmul.f32 %v1375, %v1235
      %v1444 = vmul.f32 %v1378, %v1245
      %v1445 = vmul.f32 %v1381, %v1255
      %v1446 = vmul.f32 %v1384, %v1265
      %v1447 = vmul.f32 %v1387, %v1275
      %v1448 = vmul.f32 %v1390, %v1285
      %1449 = vxpose.xlu0.b32.start [1/16] %v1215, 128
      %1450 = vxpose.xlu0.b32.cont [2/16] %v1225, 128
      %1451 = vxpose.xlu0.b32.cont [3/16] %v1235, 128
      %1452 = vxpose.xlu0.b32.cont [4/16] %v1245, 128
      %1453 = vxpose.xlu0.b32.cont [5/16] %v1255, 128
      %1454 = vxpose.xlu0.b32.cont [6/16] %v1265, 128
      %1455 = vxpose.xlu0.b32.cont [7/16] %v1275, 128
      %1456 = vxpose.xlu0.b32.cont [8/16] %v1285, 128
      %1457 = vxpose.xlu0.b32.cont [9/16] 0.0, 128
      %1458 = vxpose.xlu0.b32.cont [10/16] 0.0, 128
      %1459 = vxpose.xlu0.b32.cont [11/16] 0.0, 128
      %1460 = vxpose.xlu0.b32.cont [12/16] 0.0, 128
      %1461 = vxpose.xlu0.b32.cont [13/16] 0.0, 128
      %1462 = vxpose.xlu0.b32.cont [14/16] 0.0, 128
      %1463 = vxpose.xlu0.b32.cont [15/16] 0.0, 128
      %1464 = vxpose.xlu0.b32.end [16/16] 0.0, 128
      %v1465 = vpop.trf.xlu0
      %v1466 = vpop.trf.xlu0
      %v1467 = vpop.trf.xlu0
      %v1468 = vpop.trf.xlu0
      %v1469 = vpop.trf.xlu0
      %v1470 = vpop.trf.xlu0
      %v1471 = vpop.trf.xlu0
      %v1472 = vpop.trf.xlu0
      %v1473 = vpop.trf.xlu0
      %v1474 = vpop.trf.xlu0
      %v1475 = vpop.trf.xlu0
      %v1476 = vpop.trf.xlu0
      %v1477 = vpop.trf.xlu0
      %v1478 = vpop.trf.xlu0
      %v1479 = vpop.trf.xlu0
      %v1480 = vpop.trf.xlu0
      %v1481 = vperm.slane %v1465, 0
      %v1482 = vmul.f32 %v1441, %v1481
      %v1483 = vmul.f32 %v1442, %v1481
      %v1484 = vmul.f32 %v1443, %v1481
      %v1485 = vmul.f32 %v1444, %v1481
      %v1486 = vmul.f32 %v1445, %v1481
      %v1487 = vmul.f32 %v1446, %v1481
      %v1488 = vmul.f32 %v1447, %v1481
      %v1489 = vmul.f32 %v1448, %v1481
      %v1490 = vsub.f32 %v1433, %v1482
      %v1491 = vsub.f32 %v1434, %v1483
      %v1492 = vsub.f32 %v1435, %v1484
      %v1493 = vsub.f32 %v1436, %v1485
      %v1494 = vsub.f32 %v1437, %v1486
      %v1495 = vsub.f32 %v1438, %v1487
      %v1496 = vsub.f32 %v1439, %v1488
      %v1497 = vsub.f32 %v1440, %v1489
      %v1498 = vand.u32 2147483647, %v1490
      %v1499 = vand.u32 2147483647, %v1491
      %v1500 = vand.u32 2147483647, %v1492
      %v1501 = vand.u32 2147483647, %v1493
      %v1502 = vand.u32 2147483647, %v1494
      %v1503 = vand.u32 2147483647, %v1495
      %v1504 = vand.u32 2147483647, %v1496
      %v1505 = vand.u32 2147483647, %v1497
      %v1506 = vsel %vm97, %v1498, 0.0
      %1507 = vadd.xlane.f32.xlu0 %v1506
      %v1508 = vpop.xlane.xlu0 %1507
      %v1509 = vsel %vm97, %v1499, 0.0
      %1510 = vadd.xlane.f32.xlu0 %v1509
      %v1511 = vpop.xlane.xlu0 %1510
      %v1512 = vsel %vm97, %v1500, 0.0
      %1513 = vadd.xlane.f32.xlu0 %v1512
      %v1514 = vpop.xlane.xlu0 %1513
      %v1515 = vsel %vm97, %v1501, 0.0
      %1516 = vadd.xlane.f32.xlu0 %v1515
      %v1517 = vpop.xlane.xlu0 %1516
      %v1518 = vsel %vm97, %v1502, 0.0
      %1519 = vadd.xlane.f32.xlu0 %v1518
      %v1520 = vpop.xlane.xlu0 %1519
      %v1521 = vsel %vm97, %v1503, 0.0
      %1522 = vadd.xlane.f32.xlu0 %v1521
      %v1523 = vpop.xlane.xlu0 %1522
      %v1524 = vsel %vm97, %v1504, 0.0
      %1525 = vadd.xlane.f32.xlu0 %v1524
      %v1526 = vpop.xlane.xlu0 %1525
      %v1527 = vsel %vm97, %v1505, 0.0
      %1528 = vadd.xlane.f32.xlu0 %v1527
      %v1529 = vpop.xlane.xlu0 %1528
      %v1530 = vadd.f32 %v1508, %v1511
      %v1531 = vadd.f32 %v1530, %v1514
      %v1532 = vadd.f32 %v1531, %v1517
      %v1533 = vadd.f32 %v1532, %v1520
      %v1534 = vadd.f32 %v1533, %v1523
      %v1535 = vadd.f32 %v1534, %v1526
      %v1536 = vadd.f32 %v1535, %v1529
      %v1537 = vrot.slane %v1536, 4
      %v1538 = vadd.f32 %v1536, %v1537
      %v1539 = vrot.slane %v1538, 2
      %v1540 = vadd.f32 %v1538, %v1539
      %v1541 = vrot.slane %v1540, 1
      %v1542 = vadd.f32 %v1540, %v1541
      %v1543 = vmul.f32 %v1542, 0.00024414063
      %1544 = vst.msk [vmem:[#allocation8] sm:$0x1] %vm360, %v1543
    $region29: #{style_loss_forward.1} parent=1 // pred_fallthru
      _
    // Predicated region
    $region30: #{style_loss_forward.1} parent=1 // pred_check
      _
    $region31: #{style_loss_forward.1} parent=1 // pred_check_branch
      %1546 = sbr.rel (0) target = $region33
    $region32: #{style_loss_forward.1} parent=1 // pred_region
      %1548 = vsyncadd [#allocation9], 0
      %s1550 = sshll.u32 [#allocation8], 4
      %s1551 = int_to_ptr.vmem [resolvable:$true] %s1550
      %s1552 = sshll.u32 %s5, 4
      %s1553 = int_to_ptr.hbm [resolvable:$true] %s1552
      %1555 = dma.vmem_to_hbm [thread:$0]  %s1551, 16, %s1553, [#allocation9]
    $region33: #{style_loss_forward.1} parent=1 // pred_fallthru
      _
    // Predicated region
    $region34: #{style_loss_forward.1} parent=1 // pred_check
      _
    $region35: #{style_loss_forward.1} parent=1 // pred_check_branch
      %1557 = sbr.rel (0) target = $region37
    $region36: #{style_loss_forward.1} parent=1 // pred_region
      %1559 = vsyncadd [#allocation11], 0
      %s1561 = sshll.u32 [#allocation10], 4
      %s1562 = int_to_ptr.vmem [resolvable:$true] %s1561
      %s1563 = sshll.u32 %s6, 4
      %s1564 = int_to_ptr.hbm [resolvable:$true] %s1563
      %1566 = dma.vmem_to_hbm [thread:$0]  %s1562, 16, %s1564, [#allocation11]
    $region37: #{style_loss_forward.1} parent=1 // pred_fallthru
      _
    // Predicated region
    $region38: #{style_loss_forward.1} parent=1 // pred_check
      _
    $region39: #{style_loss_forward.1} parent=1 // pred_check_branch
      %1568 = sbr.rel (0) target = $region41
    $region40: #{style_loss_forward.1} parent=1 // pred_region
      %1570 = vsyncadd [#allocation11], 0
      %s1572 = sshll.u32 [#allocation12], 4
      %s1573 = int_to_ptr.vmem [resolvable:$true] %s1572
      %s1574 = sshll.u32 %s7, 4
      %s1575 = int_to_ptr.hbm [resolvable:$true] %s1574
      %1577 = dma.vmem_to_hbm [thread:$0]  %s1573, 16, %s1575, [#allocation11]
    $region41: #{style_loss_forward.1} parent=1 // pred_fallthru
      _
    // Predicated region
    $region42: #{style_loss_forward.1} parent=1 // pred_check
      _
    $region43: #{style_loss_forward.1} parent=1 // pred_check_branch
      %1579 = sbr.rel (0) target = $region45
    $region44: #{style_loss_forward.1} parent=1 // pred_region
      %1581 = vsyncadd [#allocation14], 0
      %s1583 = sshll.u32 [#allocation13], 4
      %s1584 = int_to_ptr.vmem [resolvable:$true] %s1583
      %s1585 = sshll.u32 %s8, 4
      %s1586 = int_to_ptr.hbm [resolvable:$true] %s1585
      %1588 = dma.vmem_to_hbm [thread:$0]  %s1584, 16, %s1586, [#allocation14]
    $region45: #{style_loss_forward.1} parent=1 // pred_fallthru
      _
    // Predicated region
    $region46: #{style_loss_forward.1} parent=1 // pred_check
      _
    $region47: #{style_loss_forward.1} parent=1 // pred_check_branch
      %1590 = sbr.rel (0) target = $region49
    $region48: #{style_loss_forward.1} parent=1 // pred_region
      %1592 = dma.done [#allocation9], 16
    $region49: #{style_loss_forward.1} parent=1 // pred_fallthru
      _
    // Predicated region
    $region50: #{style_loss_forward.1} parent=1 // pred_check
      _
    $region51: #{style_loss_forward.1} parent=1 // pred_check_branch
      %1594 = sbr.rel (0) target = $region53
    $region52: #{style_loss_forward.1} parent=1 // pred_region
      %1596 = dma.done [#allocation11], 16
    $region53: #{style_loss_forward.1} parent=1 // pred_fallthru
      _
    // Predicated region
    $region54: #{style_loss_forward.1} parent=1 // pred_check
      _
    $region55: #{style_loss_forward.1} parent=1 // pred_check_branch
      %1598 = sbr.rel (0) target = $region57
    $region56: #{style_loss_forward.1} parent=1 // pred_region
      %1600 = dma.done [#allocation11], 16
    $region57: #{style_loss_forward.1} parent=1 // pred_fallthru
      _
    // Predicated region
    $region58: #{style_loss_forward.1} parent=1 // pred_check
      _
    $region59: #{style_loss_forward.1} parent=1 // pred_check_branch
      %1602 = sbr.rel (0) target = $region61
    $region60: #{style_loss_forward.1} parent=1 // pred_region
      %1604 = dma.done [#allocation14], 16
    $region61: #{style_loss_forward.1} parent=1 // pred_fallthru
      _
    %1605 = vsyncpa [#allocation9], 1
    %1606 = vsyncpa [#allocation11], 1
    %1607 = vsyncpa [#allocation14], 1

</llo_original>
